<compile_context>
chip_gen: v7x
topology: tpu7x:2x2x1
jax: 0.10.0
libtpu: 0.0.40
codegen_flags: <defaults>
</compile_context>

<pallas_src>
import functools

import jax
import jax.numpy as jnp
import numpy as np
from jax import lax
from jax.experimental import pallas as pl
from jax.experimental.pallas import tpu as pltpu

LANE = 128
SUB = 8
MAX_TR = 512          # 512 rows already ~85% of HBM roofline; diminishing returns beyond
INTERM_PLANES = 48    # conservative estimate of live (TR,128) elementwise temporaries
TWO_PI = 2.0 * np.pi


def _cdiv(a, b):
    return -(-a // b)


def _round_up(a, b):
    return _cdiv(a, b) * b


def _mobius_kernel(in_ref, out_ref, *, K, cross_txy, unroll):
    # in_ref block: (4K+6, TR, 128); planes = [x0..x2, y0..y2, softplus(w)_0..K-1, w(3K)]
    x = [in_ref[d] for d in range(3)]
    y = [in_ref[3 + d] for d in range(3)]
    c0 = 6

    # hoisted constants (JAX does not CSE broadcast_in_dim; do it once)
    zero = jnp.zeros_like(x[0])
    one = zero + 1.0
    two = zero + 2.0
    c07 = zero + 0.7
    two_pi = zero + jnp.float32(TWO_PI)

    def recip(d):
        # EUP approximate seed + one Newton step on the VALU (~f32 accuracy,
        # cheaper on the VALU slot than the exact divide lowering).
        r0 = pl.reciprocal(d, approx=True)
        return r0 * (two - d * r0)

    # r = -x / ||x||
    inv_xn = lax.rsqrt(x[0] * x[0] + x[1] * x[1] + x[2] * x[2])
    r = [-x[d] * inv_xn for d in range(3)]

    # v = cross(y, r) / ||cross(y, r)||
    v = [
        y[1] * r[2] - y[2] * r[1],
        y[2] * r[0] - y[0] * r[2],
        y[0] * r[1] - y[1] * r[0],
    ]
    inv_vn = lax.rsqrt(v[0] * v[0] + v[1] * v[1] + v[2] * v[2])
    v = [v[d] * inv_vn for d in range(3)]

    def k_term(wt, wv, carry):
        tx_ang, dtx, wsum = carry
        # tangent projection: w <- (I - y y^T) w
        ydotw = y[0] * wv[0] + y[1] * wv[1] + y[2] * wv[2]
        wp = [wv[d] - y[d] * ydotw for d in range(3)]
        wn2p = wp[0] * wp[0] + wp[1] * wp[1] + wp[2] * wp[2]
        wn = jnp.sqrt(wn2p)
        s = c07 * recip(one + wn)                 # 0.7 / (1 + ||w||)
        wk = [s * wp[d] for d in range(3)]
        wn2 = (s * s) * wn2p                      # ||0.7/(1+||w||) w||^2

        # mobius map h(x) and its angle in the (r, v) frame
        dk = [x[d] - wk[d] for d in range(3)]
        dn2 = dk[0] * dk[0] + dk[1] * dk[1] + dk[2] * dk[2]
        coef = (one - wn2) * recip(dn2)
        h = [coef * dk[d] - wk[d] for d in range(3)]
        hv = h[0] * v[0] + h[1] * v[1] + h[2] * v[2]
        hr = h[0] * r[0] + h[1] * r[1] + h[2] * r[2]
        ang = jnp.arctan2(hv, hr)
        ang = jnp.where(ang >= zero, ang, ang + two_pi)

        # Jacobian term: ||(1-||w||^2)(I-2uu^T)dz / ||x-w||^2|| == coef
        # (Householder factor is orthogonal, dz is unit).
        return (tx_ang + wt * ang, dtx + wt * coef, wsum + wt)

    init = (zero, zero, zero)
    if unroll:
        carry = init
        for k in range(K):
            wt = in_ref[c0 + k]
            wv = [in_ref[c0 + K + 3 * k + d] for d in range(3)]
            carry = k_term(wt, wv, carry)
    else:
        def body(k, carry):
            wt = in_ref[c0 + k]
            wv = [in_ref[c0 + K + 3 * k + d] for d in range(3)]
            return k_term(wt, wv, carry)
        carry = lax.fori_loop(0, K, body, init, unroll=2)
    tx_ang, dtx, wsum = carry

    inv_wsum = recip(wsum)
    tx_ang = tx_ang * inv_wsum
    ct = jnp.cos(tx_ang)
    st = jnp.sin(tx_ang)
    tx = [r[d] * ct + v[d] * st for d in range(3)]
    ldj = jnp.log(dtx * inv_wsum)

    if cross_txy:  # tz = cross(tx, y)
        tz = [
            tx[1] * y[2] - tx[2] * y[1],
            tx[2] * y[0] - tx[0] * y[2],
            tx[0] * y[1] - tx[1] * y[0],
        ]
    else:          # tz = cross(y, tx)
        tz = [
            y[1] * tx[2] - y[2] * tx[1],
            y[2] * tx[0] - y[0] * tx[2],
            y[0] * tx[1] - y[1] * tx[0],
        ]
    inv_tzn = lax.rsqrt(tz[0] * tz[0] + tz[1] * tz[1] + tz[2] * tz[2])

    for d in range(3):
        out_ref[d] = tx[d]
        out_ref[3 + d] = tz[d] * inv_tzn
    out_ref[6] = ldj


def mobius_flow_4nd_forward(rotation, conditions, permute, K):
    """rotation: (BS, N, 3, 3); conditions: (BS, N, 4K). Returns (trotation, ldj)."""
    BS, N = rotation.shape[0], rotation.shape[1]
    M = BS * N
    F_IN = 4 * K + 6
    F_OUT = 7

    rot = rotation.astype(jnp.float32)
    x = rot[..., permute[0]].reshape(M, 3)
    y = rot[..., permute[1]].reshape(M, 3)
    cond = conditions.reshape(M, 4 * K).astype(jnp.float32)
    # softplus of mixture weights fused into the HBM-bound packing pass.
    weights_sp = jax.nn.softplus(cond[:, :K])
    w_flat = cond[:, K:]

    # ---------- generation-aware tiling ----------
    Rp0 = max(SUB, _round_up(_cdiv(M, LANE), SUB))     # 8-sublane row groups needed

    try:
        vmem_cap = int(pltpu.get_tpu_info().vmem_capacity_bytes)
    except Exception:
        vmem_cap = 64 * 1024 * 1024                     # v7x per-TC (smallest supported)

    budget = vmem_cap // 2                              # headroom for compiler scratch
    row_bytes = (2 * (F_IN + F_OUT) + INTERM_PLANES) * LANE * 4   # per sublane row
    max_tr = max(SUB, min(MAX_TR, (budget // row_bytes) // SUB * SUB))

    n_steps = _cdiv(Rp0, max_tr)
    if Rp0 >= 2 * SUB:
        n_steps = max(n_steps, 2)       # >= 2 grid steps so both v7x TCs get work
    TR = _round_up(_cdiv(Rp0, n_steps), SUB)            # bounded padding
    grid_n = _cdiv(Rp0, TR)
    Rp = grid_n * TR
    Mp = Rp * LANE

    # ---------- single fused pad + transpose of the input ----------
    # Padded rows get a valid frame (x=(1,0,0), y=(0,1,0), weights=1, w=0) so
    # every intermediate stays finite.
    pad_vec = np.zeros((F_IN,), np.float32)
    pad_vec[0] = 1.0
    pad_vec[4] = 1.0
    pad_vec[6:6 + K] = 1.0
    row_feat = jnp.concatenate([x, y, weights_sp, w_flat], axis=1)   # (M, F_IN)
    if Mp > M:
        pad_block = jnp.broadcast_to(jnp.asarray(pad_vec), (Mp - M, F_IN))
        row_feat = jnp.concatenate([row_feat, pad_block], axis=0)
    packed = row_feat.T.reshape(F_IN, Rp, LANE)

    cross_txy = (permute[1] - permute[0] == 1) or (permute[1] - permute[0] == -2)

    block_bytes = (2 * (F_IN + F_OUT) + INTERM_PLANES) * TR * LANE * 4
    vmem_limit = max(32 * 1024 * 1024, block_bytes + 16 * 1024 * 1024)
    vmem_limit = min(vmem_limit, vmem_cap)

    cost = pl.CostEstimate(
        flops=int(Mp * (45 * K + 50)),
        transcendentals=int(Mp * (3 * K + 8)),
        bytes_accessed=int(Mp * (F_IN + F_OUT) * 4),
    )

    kern = functools.partial(_mobius_kernel, K=K, cross_txy=cross_txy, unroll=(K <= 8))
    out_packed = pl.pallas_call(
        kern,
        out_shape=jax.ShapeDtypeStruct((F_OUT, Rp, LANE), jnp.float32),
        grid=(grid_n,),
        in_specs=[pl.BlockSpec((F_IN, TR, LANE), lambda i: (0, i, 0))],
        out_specs=pl.BlockSpec((F_OUT, TR, LANE), lambda i: (0, i, 0)),
        compiler_params=pltpu.CompilerParams(
            dimension_semantics=("parallel",),
            vmem_limit_bytes=int(vmem_limit),
        ),
        cost_estimate=cost,
    )(packed)

    # ---------- single combined output transpose ----------
    flat = out_packed.reshape(F_OUT, Mp)[:, :M].T     # (M, 7)
    tx = flat[:, 0:3].reshape(BS, N, 3)
    tz = flat[:, 3:6].reshape(BS, N, 3)
    ldj = flat[:, 6].reshape(BS, N)

    cols = [None, None, None]
    cols[permute[0]] = tx
    cols[permute[1]] = rot[..., permute[1]]
    cols[permute[2]] = tz
    trotation = jnp.stack(cols, axis=-1)
    return trotation, ldj.sum(axis=-1)


def mobius_flow_4nd_forward_ref(rotation, conditions, permute, K):
    """Pure-JAX reference mirroring the PyTorch module (for verification)."""
    x = rotation[..., permute[0]]
    y = rotation[..., permute[1]]
    BS, N = rotation.shape[0], rotation.shape[1]
    weights = conditions[..., :K]
    w = conditions[..., K:].reshape(BS, N, K, 3)
    proj = jnp.eye(3, dtype=rotation.dtype) - jnp.einsum("nmi,nmj->nmij", y, y)
    w = jnp.einsum("nmij,nmkj->nmki", proj, w)
    r = -x
    r = r / jnp.linalg.norm(r, axis=-1, keepdims=True)
    v = jnp.cross(y, r)
    v = v / jnp.linalg.norm(v, axis=-1, keepdims=True)
    weights = jax.nn.softplus(weights)
    weights = weights / weights.sum(axis=-1, keepdims=True)
    w = 0.7 / (1.0 + jnp.linalg.norm(w, axis=-1, keepdims=True)) * w

    z = x
    zw = z[:, :, None, :] - w
    wn = jnp.linalg.norm(w, axis=-1, keepdims=True)
    h = (1.0 - wn**2) / jnp.linalg.norm(zw, axis=-1, keepdims=True) ** 2 * zw - w
    radians = jnp.arctan2(
        jnp.einsum("nmki,nmi->nmk", h, v), jnp.einsum("nmki,nmi->nmk", h, r)
    )
    txa = jnp.where(radians >= 0, radians, radians + TWO_PI)
    txa = jnp.sum(weights * txa, axis=2, keepdims=True)
    tx = r * jnp.cos(txa) + v * jnp.sin(txa)

    zwn = jnp.linalg.norm(zw, axis=-1)
    zwu = zw / zwn[..., None]
    theta = jnp.arctan2(
        jnp.einsum("nmi,nmi->nm", x, v), jnp.einsum("nmi,nmi->nm", x, r)
    )[..., None]
    dz = -jnp.sin(theta) * r + jnp.cos(theta) * v
    dh_dz = (
        (1.0 - jnp.linalg.norm(w, axis=-1) ** 2)[..., None, None]
        * (jnp.eye(3, dtype=rotation.dtype) - 2.0 * jnp.einsum("nmki,nmkj->nmkij", zwu, zwu))
        / zwn[..., None, None] ** 2
    )
    dh_dtheta = jnp.einsum("nmkpq,nmq->nmkp", dh_dz, dz)
    dtx = jnp.sum(jnp.linalg.norm(dh_dtheta, axis=-1) * weights, axis=2)
    ldj = jnp.log(dtx)

    if permute[1] - permute[0] == 1 or permute[1] - permute[0] == -2:
        tz = jnp.cross(tx, y)
    else:
        tz = jnp.cross(y, tx)
    tz = tz / jnp.linalg.norm(tz, axis=-1, keepdims=True)
    cols = [None, None, None]
    cols[permute[0]] = tx
    cols[permute[1]] = y
    cols[permute[2]] = tz
    trot = jnp.stack(cols, axis=-1)
    return trot, ldj.sum(axis=-1)


if __name__ == "__main__":
    def _make_inputs(key, BS, N, K):
        ka, kb, kc = jax.random.split(key, 3)
        a = jax.random.normal(ka, (BS, N, 3), dtype=jnp.float32)
        b = jax.random.normal(kb, (BS, N, 3), dtype=jnp.float32)
        xcol = a / jnp.linalg.norm(a, axis=-1, keepdims=True)
        b_orth = b - jnp.sum(b * xcol, axis=-1, keepdims=True) * xcol
        ycol = b_orth / jnp.linalg.norm(b_orth, axis=-1, keepdims=True)
        zcol = jnp.cross(xcol, ycol)
        rotation = jnp.stack([xcol, ycol, zcol], axis=-1)   # (BS, N, 3, 3)
        conditions = 0.5 * jax.random.normal(kc, (BS, N, 4 * K), dtype=jnp.float32)
        return rotation, conditions

    key = jax.random.PRNGKey(0)
    k1, k2 = jax.random.split(key)

    cases = [
        (2, 8, 4, (0, 1, 2), k1),    # unrolled K path, tz = cross(tx, y)
        (3, 5, 12, (0, 2, 1), k2),   # fori_loop K path, tz = cross(y, tx), padded rows
    ]
    for (BS, N, K, permute, kk) in cases:
        rotation, conditions = _make_inputs(kk, BS, N, K)
        trot, ldj = mobius_flow_4nd_forward(rotation, conditions, permute, K)
        trot = jax.block_until_ready(trot)
        ldj = jax.block_until_ready(ldj)
        trot_ref, ldj_ref = mobius_flow_4nd_forward_ref(rotation, conditions, permute, K)
        assert trot.shape == (BS, N, 3, 3) and ldj.shape == (BS,)
        assert np.allclose(np.asarray(trot), np.asarray(trot_ref), rtol=1e-4, atol=1e-4)
        assert np.allclose(np.asarray(ldj), np.asarray(ldj_ref), rtol=1e-4, atol=1e-4)

    print("KERNEL_OK")
</pallas_src>

<mosaic_0001>
module attributes {stable_mosaic.version = 11 : i64} {
  func.func @_mobius_kernel(%arg0: i32, %arg1: memref<22x8x128xf32, #tpu.memory_space<vmem>>, %arg2: memref<7x8x128xf32, #tpu.memory_space<vmem>>) attributes {dimension_semantics = [#tpu.dimension_semantics<parallel>], iteration_bounds = array<i64: 1>, scalar_prefetch = 0 : i64, scratch_operands = 0 : i64, tpu.core_type = #tpu.core_type<tc>, window_params = [{transform_indices = @transform_0, window_bounds = array<i64: 22, 8, 128>}, {transform_indices = @transform_1, window_bounds = array<i64: 7, 8, 128>}]} {
    %c0 = arith.constant 0 : index
    %c0_0 = arith.constant 0 : index
    %c0_1 = arith.constant 0 : index
    %0 = vector.load %arg1[%c0, %c0_0, %c0_1] : memref<22x8x128xf32, #tpu.memory_space<vmem>>, vector<1x8x128xf32>
    %1 = vector.shape_cast %0 : vector<1x8x128xf32> to vector<8x128xf32>
    %c1 = arith.constant 1 : index
    %c0_2 = arith.constant 0 : index
    %c0_3 = arith.constant 0 : index
    %2 = vector.load %arg1[%c1, %c0_2, %c0_3] : memref<22x8x128xf32, #tpu.memory_space<vmem>>, vector<1x8x128xf32>
    %3 = vector.shape_cast %2 : vector<1x8x128xf32> to vector<8x128xf32>
    %c2 = arith.constant 2 : index
    %c0_4 = arith.constant 0 : index
    %c0_5 = arith.constant 0 : index
    %4 = vector.load %arg1[%c2, %c0_4, %c0_5] : memref<22x8x128xf32, #tpu.memory_space<vmem>>, vector<1x8x128xf32>
    %5 = vector.shape_cast %4 : vector<1x8x128xf32> to vector<8x128xf32>
    %c3 = arith.constant 3 : index
    %c0_6 = arith.constant 0 : index
    %c0_7 = arith.constant 0 : index
    %6 = vector.load %arg1[%c3, %c0_6, %c0_7] : memref<22x8x128xf32, #tpu.memory_space<vmem>>, vector<1x8x128xf32>
    %7 = vector.shape_cast %6 : vector<1x8x128xf32> to vector<8x128xf32>
    %c4 = arith.constant 4 : index
    %c0_8 = arith.constant 0 : index
    %c0_9 = arith.constant 0 : index
    %8 = vector.load %arg1[%c4, %c0_8, %c0_9] : memref<22x8x128xf32, #tpu.memory_space<vmem>>, vector<1x8x128xf32>
    %9 = vector.shape_cast %8 : vector<1x8x128xf32> to vector<8x128xf32>
    %c5 = arith.constant 5 : index
    %c0_10 = arith.constant 0 : index
    %c0_11 = arith.constant 0 : index
    %10 = vector.load %arg1[%c5, %c0_10, %c0_11] : memref<22x8x128xf32, #tpu.memory_space<vmem>>, vector<1x8x128xf32>
    %11 = vector.shape_cast %10 : vector<1x8x128xf32> to vector<8x128xf32>
    %cst = arith.constant 0.000000e+00 : f32
    %12 = vector.broadcast %cst : f32 to vector<8x128xf32>
    %cst_12 = arith.constant 1.000000e+00 : f32
    %13 = vector.broadcast %cst_12 : f32 to vector<8x128xf32>
    %14 = arith.addf %12, %13 : vector<8x128xf32>
    %cst_13 = arith.constant 2.000000e+00 : f32
    %15 = vector.broadcast %cst_13 : f32 to vector<8x128xf32>
    %16 = arith.addf %12, %15 : vector<8x128xf32>
    %cst_14 = arith.constant 0.699999988 : f32
    %17 = vector.broadcast %cst_14 : f32 to vector<8x128xf32>
    %18 = arith.addf %12, %17 : vector<8x128xf32>
    %cst_15 = arith.constant 6.28318548 : f32
    %19 = vector.broadcast %cst_15 : f32 to vector<8x128xf32>
    %20 = arith.addf %12, %19 : vector<8x128xf32>
    %21 = arith.mulf %1, %1 : vector<8x128xf32>
    %22 = arith.mulf %3, %3 : vector<8x128xf32>
    %23 = arith.addf %21, %22 : vector<8x128xf32>
    %24 = arith.mulf %5, %5 : vector<8x128xf32>
    %25 = arith.addf %23, %24 : vector<8x128xf32>
    %26 = math.rsqrt %25 : vector<8x128xf32>
    %cst_16 = arith.constant 0.000000e+00 : f32
    %27 = vector.broadcast %cst_16 : f32 to vector<8x128xf32>
    %28 = arith.subf %27, %1 : vector<8x128xf32>
    %29 = arith.mulf %28, %26 : vector<8x128xf32>
    %cst_17 = arith.constant 0.000000e+00 : f32
    %30 = vector.broadcast %cst_17 : f32 to vector<8x128xf32>
    %31 = arith.subf %30, %3 : vector<8x128xf32>
    %32 = arith.mulf %31, %26 : vector<8x128xf32>
    %cst_18 = arith.constant 0.000000e+00 : f32
    %33 = vector.broadcast %cst_18 : f32 to vector<8x128xf32>
    %34 = arith.subf %33, %5 : vector<8x128xf32>
    %35 = arith.mulf %34, %26 : vector<8x128xf32>
    %36 = arith.mulf %9, %35 : vector<8x128xf32>
    %37 = arith.mulf %11, %32 : vector<8x128xf32>
    %38 = arith.subf %36, %37 : vector<8x128xf32>
    %39 = arith.mulf %11, %29 : vector<8x128xf32>
    %40 = arith.mulf %7, %35 : vector<8x128xf32>
    %41 = arith.subf %39, %40 : vector<8x128xf32>
    %42 = arith.mulf %7, %32 : vector<8x128xf32>
    %43 = arith.mulf %9, %29 : vector<8x128xf32>
    %44 = arith.subf %42, %43 : vector<8x128xf32>
    %45 = arith.mulf %38, %38 : vector<8x128xf32>
    %46 = arith.mulf %41, %41 : vector<8x128xf32>
    %47 = arith.addf %45, %46 : vector<8x128xf32>
    %48 = arith.mulf %44, %44 : vector<8x128xf32>
    %49 = arith.addf %47, %48 : vector<8x128xf32>
    %50 = math.rsqrt %49 : vector<8x128xf32>
    %51 = arith.mulf %38, %50 : vector<8x128xf32>
    %52 = arith.mulf %41, %50 : vector<8x128xf32>
    %53 = arith.mulf %44, %50 : vector<8x128xf32>
    %c6 = arith.constant 6 : index
    %c0_19 = arith.constant 0 : index
    %c0_20 = arith.constant 0 : index
    %54 = vector.load %arg1[%c6, %c0_19, %c0_20] : memref<22x8x128xf32, #tpu.memory_space<vmem>>, vector<1x8x128xf32>
    %55 = vector.shape_cast %54 : vector<1x8x128xf32> to vector<8x128xf32>
    %c10 = arith.constant 10 : index
    %c0_21 = arith.constant 0 : index
    %c0_22 = arith.constant 0 : index
    %56 = vector.load %arg1[%c10, %c0_21, %c0_22] : memref<22x8x128xf32, #tpu.memory_space<vmem>>, vector<1x8x128xf32>
    %57 = vector.shape_cast %56 : vector<1x8x128xf32> to vector<8x128xf32>
    %c11 = arith.constant 11 : index
    %c0_23 = arith.constant 0 : index
    %c0_24 = arith.constant 0 : index
    %58 = vector.load %arg1[%c11, %c0_23, %c0_24] : memref<22x8x128xf32, #tpu.memory_space<vmem>>, vector<1x8x128xf32>
    %59 = vector.shape_cast %58 : vector<1x8x128xf32> to vector<8x128xf32>
    %c12 = arith.constant 12 : index
    %c0_25 = arith.constant 0 : index
    %c0_26 = arith.constant 0 : index
    %60 = vector.load %arg1[%c12, %c0_25, %c0_26] : memref<22x8x128xf32, #tpu.memory_space<vmem>>, vector<1x8x128xf32>
    %61 = vector.shape_cast %60 : vector<1x8x128xf32> to vector<8x128xf32>
    %62 = arith.mulf %7, %57 : vector<8x128xf32>
    %63 = arith.mulf %9, %59 : vector<8x128xf32>
    %64 = arith.addf %62, %63 : vector<8x128xf32>
    %65 = arith.mulf %11, %61 : vector<8x128xf32>
    %66 = arith.addf %64, %65 : vector<8x128xf32>
    %67 = arith.mulf %7, %66 : vector<8x128xf32>
    %68 = arith.subf %57, %67 : vector<8x128xf32>
    %69 = arith.mulf %9, %66 : vector<8x128xf32>
    %70 = arith.subf %59, %69 : vector<8x128xf32>
    %71 = arith.mulf %11, %66 : vector<8x128xf32>
    %72 = arith.subf %61, %71 : vector<8x128xf32>
    %73 = arith.mulf %68, %68 : vector<8x128xf32>
    %74 = arith.mulf %70, %70 : vector<8x128xf32>
    %75 = arith.addf %73, %74 : vector<8x128xf32>
    %76 = arith.mulf %72, %72 : vector<8x128xf32>
    %77 = arith.addf %75, %76 : vector<8x128xf32>
    %78 = math.sqrt %77 : vector<8x128xf32>
    %79 = arith.addf %14, %78 : vector<8x128xf32>
    %80 = tpu.reciprocal %79 {approx = true} : vector<8x128xf32> -> vector<8x128xf32>
    %81 = arith.mulf %79, %80 : vector<8x128xf32>
    %82 = arith.subf %16, %81 : vector<8x128xf32>
    %83 = arith.mulf %80, %82 : vector<8x128xf32>
    %84 = arith.mulf %18, %83 : vector<8x128xf32>
    %85 = arith.mulf %84, %68 : vector<8x128xf32>
    %86 = arith.mulf %84, %70 : vector<8x128xf32>
    %87 = arith.mulf %84, %72 : vector<8x128xf32>
    %88 = arith.mulf %84, %84 : vector<8x128xf32>
    %89 = arith.mulf %88, %77 : vector<8x128xf32>
    %90 = arith.subf %1, %85 : vector<8x128xf32>
    %91 = arith.subf %3, %86 : vector<8x128xf32>
    %92 = arith.subf %5, %87 : vector<8x128xf32>
    %93 = arith.mulf %90, %90 : vector<8x128xf32>
    %94 = arith.mulf %91, %91 : vector<8x128xf32>
    %95 = arith.addf %93, %94 : vector<8x128xf32>
    %96 = arith.mulf %92, %92 : vector<8x128xf32>
    %97 = arith.addf %95, %96 : vector<8x128xf32>
    %98 = arith.subf %14, %89 : vector<8x128xf32>
    %99 = tpu.reciprocal %97 {approx = true} : vector<8x128xf32> -> vector<8x128xf32>
    %100 = arith.mulf %97, %99 : vector<8x128xf32>
    %101 = arith.subf %16, %100 : vector<8x128xf32>
    %102 = arith.mulf %99, %101 : vector<8x128xf32>
    %103 = arith.mulf %98, %102 : vector<8x128xf32>
    %104 = arith.mulf %103, %90 : vector<8x128xf32>
    %105 = arith.subf %104, %85 : vector<8x128xf32>
    %106 = arith.mulf %103, %91 : vector<8x128xf32>
    %107 = arith.subf %106, %86 : vector<8x128xf32>
    %108 = arith.mulf %103, %92 : vector<8x128xf32>
    %109 = arith.subf %108, %87 : vector<8x128xf32>
    %110 = arith.mulf %105, %51 : vector<8x128xf32>
    %111 = arith.mulf %107, %52 : vector<8x128xf32>
    %112 = arith.addf %110, %111 : vector<8x128xf32>
    %113 = arith.mulf %109, %53 : vector<8x128xf32>
    %114 = arith.addf %112, %113 : vector<8x128xf32>
    %115 = arith.mulf %105, %29 : vector<8x128xf32>
    %116 = arith.mulf %107, %32 : vector<8x128xf32>
    %117 = arith.addf %115, %116 : vector<8x128xf32>
    %118 = arith.mulf %109, %35 : vector<8x128xf32>
    %119 = arith.addf %117, %118 : vector<8x128xf32>
    %120 = math.atan2 %114, %119 : vector<8x128xf32>
    %121 = arith.cmpf oge, %120, %12 : vector<8x128xf32>
    %122 = arith.addf %120, %20 : vector<8x128xf32>
    %123 = arith.select %121, %120, %122 : vector<8x128xi1>, vector<8x128xf32>
    %124 = arith.mulf %55, %123 : vector<8x128xf32>
    %125 = arith.addf %12, %124 : vector<8x128xf32>
    %126 = arith.mulf %55, %103 : vector<8x128xf32>
    %127 = arith.addf %12, %126 : vector<8x128xf32>
    %128 = arith.addf %12, %55 : vector<8x128xf32>
    %c7 = arith.constant 7 : index
    %c0_27 = arith.constant 0 : index
    %c0_28 = arith.constant 0 : index
    %129 = vector.load %arg1[%c7, %c0_27, %c0_28] : memref<22x8x128xf32, #tpu.memory_space<vmem>>, vector<1x8x128xf32>
    %130 = vector.shape_cast %129 : vector<1x8x128xf32> to vector<8x128xf32>
    %c13 = arith.constant 13 : index
    %c0_29 = arith.constant 0 : index
    %c0_30 = arith.constant 0 : index
    %131 = vector.load %arg1[%c13, %c0_29, %c0_30] : memref<22x8x128xf32, #tpu.memory_space<vmem>>, vector<1x8x128xf32>
    %132 = vector.shape_cast %131 : vector<1x8x128xf32> to vector<8x128xf32>
    %c14 = arith.constant 14 : index
    %c0_31 = arith.constant 0 : index
    %c0_32 = arith.constant 0 : index
    %133 = vector.load %arg1[%c14, %c0_31, %c0_32] : memref<22x8x128xf32, #tpu.memory_space<vmem>>, vector<1x8x128xf32>
    %134 = vector.shape_cast %133 : vector<1x8x128xf32> to vector<8x128xf32>
    %c15 = arith.constant 15 : index
    %c0_33 = arith.constant 0 : index
    %c0_34 = arith.constant 0 : index
    %135 = vector.load %arg1[%c15, %c0_33, %c0_34] : memref<22x8x128xf32, #tpu.memory_space<vmem>>, vector<1x8x128xf32>
    %136 = vector.shape_cast %135 : vector<1x8x128xf32> to vector<8x128xf32>
    %137 = arith.mulf %7, %132 : vector<8x128xf32>
    %138 = arith.mulf %9, %134 : vector<8x128xf32>
    %139 = arith.addf %137, %138 : vector<8x128xf32>
    %140 = arith.mulf %11, %136 : vector<8x128xf32>
    %141 = arith.addf %139, %140 : vector<8x128xf32>
    %142 = arith.mulf %7, %141 : vector<8x128xf32>
    %143 = arith.subf %132, %142 : vector<8x128xf32>
    %144 = arith.mulf %9, %141 : vector<8x128xf32>
    %145 = arith.subf %134, %144 : vector<8x128xf32>
    %146 = arith.mulf %11, %141 : vector<8x128xf32>
    %147 = arith.subf %136, %146 : vector<8x128xf32>
    %148 = arith.mulf %143, %143 : vector<8x128xf32>
    %149 = arith.mulf %145, %145 : vector<8x128xf32>
    %150 = arith.addf %148, %149 : vector<8x128xf32>
    %151 = arith.mulf %147, %147 : vector<8x128xf32>
    %152 = arith.addf %150, %151 : vector<8x128xf32>
    %153 = math.sqrt %152 : vector<8x128xf32>
    %154 = arith.addf %14, %153 : vector<8x128xf32>
    %155 = tpu.reciprocal %154 {approx = true} : vector<8x128xf32> -> vector<8x128xf32>
    %156 = arith.mulf %154, %155 : vector<8x128xf32>
    %157 = arith.subf %16, %156 : vector<8x128xf32>
    %158 = arith.mulf %155, %157 : vector<8x128xf32>
    %159 = arith.mulf %18, %158 : vector<8x128xf32>
    %160 = arith.mulf %159, %143 : vector<8x128xf32>
    %161 = arith.mulf %159, %145 : vector<8x128xf32>
    %162 = arith.mulf %159, %147 : vector<8x128xf32>
    %163 = arith.mulf %159, %159 : vector<8x128xf32>
    %164 = arith.mulf %163, %152 : vector<8x128xf32>
    %165 = arith.subf %1, %160 : vector<8x128xf32>
    %166 = arith.subf %3, %161 : vector<8x128xf32>
    %167 = arith.subf %5, %162 : vector<8x128xf32>
    %168 = arith.mulf %165, %165 : vector<8x128xf32>
    %169 = arith.mulf %166, %166 : vector<8x128xf32>
    %170 = arith.addf %168, %169 : vector<8x128xf32>
    %171 = arith.mulf %167, %167 : vector<8x128xf32>
    %172 = arith.addf %170, %171 : vector<8x128xf32>
    %173 = arith.subf %14, %164 : vector<8x128xf32>
    %174 = tpu.reciprocal %172 {approx = true} : vector<8x128xf32> -> vector<8x128xf32>
    %175 = arith.mulf %172, %174 : vector<8x128xf32>
    %176 = arith.subf %16, %175 : vector<8x128xf32>
    %177 = arith.mulf %174, %176 : vector<8x128xf32>
    %178 = arith.mulf %173, %177 : vector<8x128xf32>
    %179 = arith.mulf %178, %165 : vector<8x128xf32>
    %180 = arith.subf %179, %160 : vector<8x128xf32>
    %181 = arith.mulf %178, %166 : vector<8x128xf32>
    %182 = arith.subf %181, %161 : vector<8x128xf32>
    %183 = arith.mulf %178, %167 : vector<8x128xf32>
    %184 = arith.subf %183, %162 : vector<8x128xf32>
    %185 = arith.mulf %180, %51 : vector<8x128xf32>
    %186 = arith.mulf %182, %52 : vector<8x128xf32>
    %187 = arith.addf %185, %186 : vector<8x128xf32>
    %188 = arith.mulf %184, %53 : vector<8x128xf32>
    %189 = arith.addf %187, %188 : vector<8x128xf32>
    %190 = arith.mulf %180, %29 : vector<8x128xf32>
    %191 = arith.mulf %182, %32 : vector<8x128xf32>
    %192 = arith.addf %190, %191 : vector<8x128xf32>
    %193 = arith.mulf %184, %35 : vector<8x128xf32>
    %194 = arith.addf %192, %193 : vector<8x128xf32>
    %195 = math.atan2 %189, %194 : vector<8x128xf32>
    %196 = arith.cmpf oge, %195, %12 : vector<8x128xf32>
    %197 = arith.addf %195, %20 : vector<8x128xf32>
    %198 = arith.select %196, %195, %197 : vector<8x128xi1>, vector<8x128xf32>
    %199 = arith.mulf %130, %198 : vector<8x128xf32>
    %200 = arith.addf %125, %199 : vector<8x128xf32>
    %201 = arith.mulf %130, %178 : vector<8x128xf32>
    %202 = arith.addf %127, %201 : vector<8x128xf32>
    %203 = arith.addf %128, %130 : vector<8x128xf32>
    %c8 = arith.constant 8 : index
    %c0_35 = arith.constant 0 : index
    %c0_36 = arith.constant 0 : index
    %204 = vector.load %arg1[%c8, %c0_35, %c0_36] : memref<22x8x128xf32, #tpu.memory_space<vmem>>, vector<1x8x128xf32>
    %205 = vector.shape_cast %204 : vector<1x8x128xf32> to vector<8x128xf32>
    %c16 = arith.constant 16 : index
    %c0_37 = arith.constant 0 : index
    %c0_38 = arith.constant 0 : index
    %206 = vector.load %arg1[%c16, %c0_37, %c0_38] : memref<22x8x128xf32, #tpu.memory_space<vmem>>, vector<1x8x128xf32>
    %207 = vector.shape_cast %206 : vector<1x8x128xf32> to vector<8x128xf32>
    %c17 = arith.constant 17 : index
    %c0_39 = arith.constant 0 : index
    %c0_40 = arith.constant 0 : index
    %208 = vector.load %arg1[%c17, %c0_39, %c0_40] : memref<22x8x128xf32, #tpu.memory_space<vmem>>, vector<1x8x128xf32>
    %209 = vector.shape_cast %208 : vector<1x8x128xf32> to vector<8x128xf32>
    %c18 = arith.constant 18 : index
    %c0_41 = arith.constant 0 : index
    %c0_42 = arith.constant 0 : index
    %210 = vector.load %arg1[%c18, %c0_41, %c0_42] : memref<22x8x128xf32, #tpu.memory_space<vmem>>, vector<1x8x128xf32>
    %211 = vector.shape_cast %210 : vector<1x8x128xf32> to vector<8x128xf32>
    %212 = arith.mulf %7, %207 : vector<8x128xf32>
    %213 = arith.mulf %9, %209 : vector<8x128xf32>
    %214 = arith.addf %212, %213 : vector<8x128xf32>
    %215 = arith.mulf %11, %211 : vector<8x128xf32>
    %216 = arith.addf %214, %215 : vector<8x128xf32>
    %217 = arith.mulf %7, %216 : vector<8x128xf32>
    %218 = arith.subf %207, %217 : vector<8x128xf32>
    %219 = arith.mulf %9, %216 : vector<8x128xf32>
    %220 = arith.subf %209, %219 : vector<8x128xf32>
    %221 = arith.mulf %11, %216 : vector<8x128xf32>
    %222 = arith.subf %211, %221 : vector<8x128xf32>
    %223 = arith.mulf %218, %218 : vector<8x128xf32>
    %224 = arith.mulf %220, %220 : vector<8x128xf32>
    %225 = arith.addf %223, %224 : vector<8x128xf32>
    %226 = arith.mulf %222, %222 : vector<8x128xf32>
    %227 = arith.addf %225, %226 : vector<8x128xf32>
    %228 = math.sqrt %227 : vector<8x128xf32>
    %229 = arith.addf %14, %228 : vector<8x128xf32>
    %230 = tpu.reciprocal %229 {approx = true} : vector<8x128xf32> -> vector<8x128xf32>
    %231 = arith.mulf %229, %230 : vector<8x128xf32>
    %232 = arith.subf %16, %231 : vector<8x128xf32>
    %233 = arith.mulf %230, %232 : vector<8x128xf32>
    %234 = arith.mulf %18, %233 : vector<8x128xf32>
    %235 = arith.mulf %234, %218 : vector<8x128xf32>
    %236 = arith.mulf %234, %220 : vector<8x128xf32>
    %237 = arith.mulf %234, %222 : vector<8x128xf32>
    %238 = arith.mulf %234, %234 : vector<8x128xf32>
    %239 = arith.mulf %238, %227 : vector<8x128xf32>
    %240 = arith.subf %1, %235 : vector<8x128xf32>
    %241 = arith.subf %3, %236 : vector<8x128xf32>
    %242 = arith.subf %5, %237 : vector<8x128xf32>
    %243 = arith.mulf %240, %240 : vector<8x128xf32>
    %244 = arith.mulf %241, %241 : vector<8x128xf32>
    %245 = arith.addf %243, %244 : vector<8x128xf32>
    %246 = arith.mulf %242, %242 : vector<8x128xf32>
    %247 = arith.addf %245, %246 : vector<8x128xf32>
    %248 = arith.subf %14, %239 : vector<8x128xf32>
    %249 = tpu.reciprocal %247 {approx = true} : vector<8x128xf32> -> vector<8x128xf32>
    %250 = arith.mulf %247, %249 : vector<8x128xf32>
    %251 = arith.subf %16, %250 : vector<8x128xf32>
    %252 = arith.mulf %249, %251 : vector<8x128xf32>
    %253 = arith.mulf %248, %252 : vector<8x128xf32>
    %254 = arith.mulf %253, %240 : vector<8x128xf32>
    %255 = arith.subf %254, %235 : vector<8x128xf32>
    %256 = arith.mulf %253, %241 : vector<8x128xf32>
    %257 = arith.subf %256, %236 : vector<8x128xf32>
    %258 = arith.mulf %253, %242 : vector<8x128xf32>
    %259 = arith.subf %258, %237 : vector<8x128xf32>
    %260 = arith.mulf %255, %51 : vector<8x128xf32>
    %261 = arith.mulf %257, %52 : vector<8x128xf32>
    %262 = arith.addf %260, %261 : vector<8x128xf32>
    %263 = arith.mulf %259, %53 : vector<8x128xf32>
    %264 = arith.addf %262, %263 : vector<8x128xf32>
    %265 = arith.mulf %255, %29 : vector<8x128xf32>
    %266 = arith.mulf %257, %32 : vector<8x128xf32>
    %267 = arith.addf %265, %266 : vector<8x128xf32>
    %268 = arith.mulf %259, %35 : vector<8x128xf32>
    %269 = arith.addf %267, %268 : vector<8x128xf32>
    %270 = math.atan2 %264, %269 : vector<8x128xf32>
    %271 = arith.cmpf oge, %270, %12 : vector<8x128xf32>
    %272 = arith.addf %270, %20 : vector<8x128xf32>
    %273 = arith.select %271, %270, %272 : vector<8x128xi1>, vector<8x128xf32>
    %274 = arith.mulf %205, %273 : vector<8x128xf32>
    %275 = arith.addf %200, %274 : vector<8x128xf32>
    %276 = arith.mulf %205, %253 : vector<8x128xf32>
    %277 = arith.addf %202, %276 : vector<8x128xf32>
    %278 = arith.addf %203, %205 : vector<8x128xf32>
    %c9 = arith.constant 9 : index
    %c0_43 = arith.constant 0 : index
    %c0_44 = arith.constant 0 : index
    %279 = vector.load %arg1[%c9, %c0_43, %c0_44] : memref<22x8x128xf32, #tpu.memory_space<vmem>>, vector<1x8x128xf32>
    %280 = vector.shape_cast %279 : vector<1x8x128xf32> to vector<8x128xf32>
    %c19 = arith.constant 19 : index
    %c0_45 = arith.constant 0 : index
    %c0_46 = arith.constant 0 : index
    %281 = vector.load %arg1[%c19, %c0_45, %c0_46] : memref<22x8x128xf32, #tpu.memory_space<vmem>>, vector<1x8x128xf32>
    %282 = vector.shape_cast %281 : vector<1x8x128xf32> to vector<8x128xf32>
    %c20 = arith.constant 20 : index
    %c0_47 = arith.constant 0 : index
    %c0_48 = arith.constant 0 : index
    %283 = vector.load %arg1[%c20, %c0_47, %c0_48] : memref<22x8x128xf32, #tpu.memory_space<vmem>>, vector<1x8x128xf32>
    %284 = vector.shape_cast %283 : vector<1x8x128xf32> to vector<8x128xf32>
    %c21 = arith.constant 21 : index
    %c0_49 = arith.constant 0 : index
    %c0_50 = arith.constant 0 : index
    %285 = vector.load %arg1[%c21, %c0_49, %c0_50] : memref<22x8x128xf32, #tpu.memory_space<vmem>>, vector<1x8x128xf32>
    %286 = vector.shape_cast %285 : vector<1x8x128xf32> to vector<8x128xf32>
    %287 = arith.mulf %7, %282 : vector<8x128xf32>
    %288 = arith.mulf %9, %284 : vector<8x128xf32>
    %289 = arith.addf %287, %288 : vector<8x128xf32>
    %290 = arith.mulf %11, %286 : vector<8x128xf32>
    %291 = arith.addf %289, %290 : vector<8x128xf32>
    %292 = arith.mulf %7, %291 : vector<8x128xf32>
    %293 = arith.subf %282, %292 : vector<8x128xf32>
    %294 = arith.mulf %9, %291 : vector<8x128xf32>
    %295 = arith.subf %284, %294 : vector<8x128xf32>
    %296 = arith.mulf %11, %291 : vector<8x128xf32>
    %297 = arith.subf %286, %296 : vector<8x128xf32>
    %298 = arith.mulf %293, %293 : vector<8x128xf32>
    %299 = arith.mulf %295, %295 : vector<8x128xf32>
    %300 = arith.addf %298, %299 : vector<8x128xf32>
    %301 = arith.mulf %297, %297 : vector<8x128xf32>
    %302 = arith.addf %300, %301 : vector<8x128xf32>
    %303 = math.sqrt %302 : vector<8x128xf32>
    %304 = arith.addf %14, %303 : vector<8x128xf32>
    %305 = tpu.reciprocal %304 {approx = true} : vector<8x128xf32> -> vector<8x128xf32>
    %306 = arith.mulf %304, %305 : vector<8x128xf32>
    %307 = arith.subf %16, %306 : vector<8x128xf32>
    %308 = arith.mulf %305, %307 : vector<8x128xf32>
    %309 = arith.mulf %18, %308 : vector<8x128xf32>
    %310 = arith.mulf %309, %293 : vector<8x128xf32>
    %311 = arith.mulf %309, %295 : vector<8x128xf32>
    %312 = arith.mulf %309, %297 : vector<8x128xf32>
    %313 = arith.mulf %309, %309 : vector<8x128xf32>
    %314 = arith.mulf %313, %302 : vector<8x128xf32>
    %315 = arith.subf %1, %310 : vector<8x128xf32>
    %316 = arith.subf %3, %311 : vector<8x128xf32>
    %317 = arith.subf %5, %312 : vector<8x128xf32>
    %318 = arith.mulf %315, %315 : vector<8x128xf32>
    %319 = arith.mulf %316, %316 : vector<8x128xf32>
    %320 = arith.addf %318, %319 : vector<8x128xf32>
    %321 = arith.mulf %317, %317 : vector<8x128xf32>
    %322 = arith.addf %320, %321 : vector<8x128xf32>
    %323 = arith.subf %14, %314 : vector<8x128xf32>
    %324 = tpu.reciprocal %322 {approx = true} : vector<8x128xf32> -> vector<8x128xf32>
    %325 = arith.mulf %322, %324 : vector<8x128xf32>
    %326 = arith.subf %16, %325 : vector<8x128xf32>
    %327 = arith.mulf %324, %326 : vector<8x128xf32>
    %328 = arith.mulf %323, %327 : vector<8x128xf32>
    %329 = arith.mulf %328, %315 : vector<8x128xf32>
    %330 = arith.subf %329, %310 : vector<8x128xf32>
    %331 = arith.mulf %328, %316 : vector<8x128xf32>
    %332 = arith.subf %331, %311 : vector<8x128xf32>
    %333 = arith.mulf %328, %317 : vector<8x128xf32>
    %334 = arith.subf %333, %312 : vector<8x128xf32>
    %335 = arith.mulf %330, %51 : vector<8x128xf32>
    %336 = arith.mulf %332, %52 : vector<8x128xf32>
    %337 = arith.addf %335, %336 : vector<8x128xf32>
    %338 = arith.mulf %334, %53 : vector<8x128xf32>
    %339 = arith.addf %337, %338 : vector<8x128xf32>
    %340 = arith.mulf %330, %29 : vector<8x128xf32>
    %341 = arith.mulf %332, %32 : vector<8x128xf32>
    %342 = arith.addf %340, %341 : vector<8x128xf32>
    %343 = arith.mulf %334, %35 : vector<8x128xf32>
    %344 = arith.addf %342, %343 : vector<8x128xf32>
    %345 = math.atan2 %339, %344 : vector<8x128xf32>
    %346 = arith.cmpf oge, %345, %12 : vector<8x128xf32>
    %347 = arith.addf %345, %20 : vector<8x128xf32>
    %348 = arith.select %346, %345, %347 : vector<8x128xi1>, vector<8x128xf32>
    %349 = arith.mulf %280, %348 : vector<8x128xf32>
    %350 = arith.addf %275, %349 : vector<8x128xf32>
    %351 = arith.mulf %280, %328 : vector<8x128xf32>
    %352 = arith.addf %277, %351 : vector<8x128xf32>
    %353 = arith.addf %278, %280 : vector<8x128xf32>
    %354 = tpu.reciprocal %353 {approx = true} : vector<8x128xf32> -> vector<8x128xf32>
    %355 = arith.mulf %353, %354 : vector<8x128xf32>
    %356 = arith.subf %16, %355 : vector<8x128xf32>
    %357 = arith.mulf %354, %356 : vector<8x128xf32>
    %358 = arith.mulf %350, %357 : vector<8x128xf32>
    %359 = math.cos %358 : vector<8x128xf32>
    %360 = math.sin %358 : vector<8x128xf32>
    %361 = arith.mulf %29, %359 : vector<8x128xf32>
    %362 = arith.mulf %51, %360 : vector<8x128xf32>
    %363 = arith.addf %361, %362 : vector<8x128xf32>
    %364 = arith.mulf %32, %359 : vector<8x128xf32>
    %365 = arith.mulf %52, %360 : vector<8x128xf32>
    %366 = arith.addf %364, %365 : vector<8x128xf32>
    %367 = arith.mulf %35, %359 : vector<8x128xf32>
    %368 = arith.mulf %53, %360 : vector<8x128xf32>
    %369 = arith.addf %367, %368 : vector<8x128xf32>
    %370 = arith.mulf %352, %357 : vector<8x128xf32>
    %371 = math.log %370 : vector<8x128xf32>
    %372 = arith.mulf %366, %11 : vector<8x128xf32>
    %373 = arith.mulf %369, %9 : vector<8x128xf32>
    %374 = arith.subf %372, %373 : vector<8x128xf32>
    %375 = arith.mulf %369, %7 : vector<8x128xf32>
    %376 = arith.mulf %363, %11 : vector<8x128xf32>
    %377 = arith.subf %375, %376 : vector<8x128xf32>
    %378 = arith.mulf %363, %9 : vector<8x128xf32>
    %379 = arith.mulf %366, %7 : vector<8x128xf32>
    %380 = arith.subf %378, %379 : vector<8x128xf32>
    %381 = arith.mulf %374, %374 : vector<8x128xf32>
    %382 = arith.mulf %377, %377 : vector<8x128xf32>
    %383 = arith.addf %381, %382 : vector<8x128xf32>
    %384 = arith.mulf %380, %380 : vector<8x128xf32>
    %385 = arith.addf %383, %384 : vector<8x128xf32>
    %386 = math.rsqrt %385 : vector<8x128xf32>
    %c0_51 = arith.constant 0 : index
    %c0_52 = arith.constant 0 : index
    %c0_53 = arith.constant 0 : index
    %387 = vector.load %arg2[%c0_51, %c0_52, %c0_53] : memref<7x8x128xf32, #tpu.memory_space<vmem>>, vector<1x8x128xf32>
    %388 = vector.shape_cast %387 : vector<1x8x128xf32> to vector<8x128xf32>
    %389 = vector.shape_cast %363 : vector<8x128xf32> to vector<1x8x128xf32>
    tpu.vector_store %arg2[%c0_51, %c0_52, %c0_53], %389 {strides = array<i32>} : memref<7x8x128xf32, #tpu.memory_space<vmem>>, vector<1x8x128xf32>,
    %390 = arith.mulf %374, %386 : vector<8x128xf32>
    %c3_54 = arith.constant 3 : index
    %c0_55 = arith.constant 0 : index
    %c0_56 = arith.constant 0 : index
    %391 = vector.load %arg2[%c3_54, %c0_55, %c0_56] : memref<7x8x128xf32, #tpu.memory_space<vmem>>, vector<1x8x128xf32>
    %392 = vector.shape_cast %391 : vector<1x8x128xf32> to vector<8x128xf32>
    %393 = vector.shape_cast %390 : vector<8x128xf32> to vector<1x8x128xf32>
    tpu.vector_store %arg2[%c3_54, %c0_55, %c0_56], %393 {strides = array<i32>} : memref<7x8x128xf32, #tpu.memory_space<vmem>>, vector<1x8x128xf32>,
    %c1_57 = arith.constant 1 : index
    %c0_58 = arith.constant 0 : index
    %c0_59 = arith.constant 0 : index
    %394 = vector.load %arg2[%c1_57, %c0_58, %c0_59] : memref<7x8x128xf32, #tpu.memory_space<vmem>>, vector<1x8x128xf32>
    %395 = vector.shape_cast %394 : vector<1x8x128xf32> to vector<8x128xf32>
    %396 = vector.shape_cast %366 : vector<8x128xf32> to vector<1x8x128xf32>
    tpu.vector_store %arg2[%c1_57, %c0_58, %c0_59], %396 {strides = array<i32>} : memref<7x8x128xf32, #tpu.memory_space<vmem>>, vector<1x8x128xf32>,
    %397 = arith.mulf %377, %386 : vector<8x128xf32>
    %c4_60 = arith.constant 4 : index
    %c0_61 = arith.constant 0 : index
    %c0_62 = arith.constant 0 : index
    %398 = vector.load %arg2[%c4_60, %c0_61, %c0_62] : memref<7x8x128xf32, #tpu.memory_space<vmem>>, vector<1x8x128xf32>
    %399 = vector.shape_cast %398 : vector<1x8x128xf32> to vector<8x128xf32>
    %400 = vector.shape_cast %397 : vector<8x128xf32> to vector<1x8x128xf32>
    tpu.vector_store %arg2[%c4_60, %c0_61, %c0_62], %400 {strides = array<i32>} : memref<7x8x128xf32, #tpu.memory_space<vmem>>, vector<1x8x128xf32>,
    %c2_63 = arith.constant 2 : index
    %c0_64 = arith.constant 0 : index
    %c0_65 = arith.constant 0 : index
    %401 = vector.load %arg2[%c2_63, %c0_64, %c0_65] : memref<7x8x128xf32, #tpu.memory_space<vmem>>, vector<1x8x128xf32>
    %402 = vector.shape_cast %401 : vector<1x8x128xf32> to vector<8x128xf32>
    %403 = vector.shape_cast %369 : vector<8x128xf32> to vector<1x8x128xf32>
    tpu.vector_store %arg2[%c2_63, %c0_64, %c0_65], %403 {strides = array<i32>} : memref<7x8x128xf32, #tpu.memory_space<vmem>>, vector<1x8x128xf32>,
    %404 = arith.mulf %380, %386 : vector<8x128xf32>
    %c5_66 = arith.constant 5 : index
    %c0_67 = arith.constant 0 : index
    %c0_68 = arith.constant 0 : index
    %405 = vector.load %arg2[%c5_66, %c0_67, %c0_68] : memref<7x8x128xf32, #tpu.memory_space<vmem>>, vector<1x8x128xf32>
    %406 = vector.shape_cast %405 : vector<1x8x128xf32> to vector<8x128xf32>
    %407 = vector.shape_cast %404 : vector<8x128xf32> to vector<1x8x128xf32>
    tpu.vector_store %arg2[%c5_66, %c0_67, %c0_68], %407 {strides = array<i32>} : memref<7x8x128xf32, #tpu.memory_space<vmem>>, vector<1x8x128xf32>,
    %c6_69 = arith.constant 6 : index
    %c0_70 = arith.constant 0 : index
    %c0_71 = arith.constant 0 : index
    %408 = vector.load %arg2[%c6_69, %c0_70, %c0_71] : memref<7x8x128xf32, #tpu.memory_space<vmem>>, vector<1x8x128xf32>
    %409 = vector.shape_cast %408 : vector<1x8x128xf32> to vector<8x128xf32>
    %410 = vector.shape_cast %371 : vector<8x128xf32> to vector<1x8x128xf32>
    tpu.vector_store %arg2[%c6_69, %c0_70, %c0_71], %410 {strides = array<i32>} : memref<7x8x128xf32, #tpu.memory_space<vmem>>, vector<1x8x128xf32>,
    return
  }
  func.func @transform_0(%arg0: i32) -> (i32, i32, i32) {
    %c0_i32 = arith.constant 0 : i32
    %c0_i32_0 = arith.constant 0 : i32
    %c0_i32_1 = arith.constant 0 : i32
    return %c0_i32, %arg0, %c0_i32_0 : i32, i32, i32
  }
  func.func @transform_1(%arg0: i32) -> (i32, i32, i32) {
    %c0_i32 = arith.constant 0 : i32
    %c0_i32_0 = arith.constant 0 : i32
    %c0_i32_1 = arith.constant 0 : i32
    return %c0_i32, %arg0, %c0_i32_0 : i32, i32, i32
  }
}

</mosaic_0001>

<llo_original>
// kernel: tpu_custom_call.1
$region0: #{tpu_custom_call.1}
  #allocation0 [shape = 'u32[]', space=smem, size = 0x4, offset = 0x4, fixed_abs, tag = 'smem constant byte address 0x4 - core index']
  #allocation1 [shape = 'u32[144,128]{1,0:T(1,128)}', space=vmem, size = 0x12000, scoped, tag = 'internal scratch']
  %s0 = inlined_call_operand.hbm [shape: f32[22,8,128], index: 0, kind: input, shape index: {}]
  %s1 = inlined_call_operand.hbm [shape: f32[7,8,128], index: 1, kind: output, shape index: {}]
  %s2 = sld [smem:[#allocation0]]
  $region18: #{tpu_custom_call.1} parent=0
    _
  %s4 = ssub.s32 1, %s2
  %s5 = scalar_select 0, %s4, %s2
  $region1: #{tpu_custom_call.1} parent=0
    #allocation2 [shape = 'u8[90112]{0}', space=vmem, size = 0x16000, scoped, tag = 'input window, operand 0, single buffered']
    #allocation3 [shape = 's32[1]{0}', space=sflag, size = 0x4, scoped, tag = 'scoped memory for tpu_custom_call.1']
    #allocation4 [shape = 's32[1]{0}', space=sflag, size = 0x4, scoped, tag = 'scoped memory for tpu_custom_call.1']
    #allocation5 [shape = 'u8[28672]{0}', space=vmem, size = 0x7000, scoped, tag = 'output window, operand 0, single buffered']
    %6 = vsyncpa [#allocation3], 0
    %7 = vsyncpa [#allocation4], 0
    // Predicated region
    $region2: #{tpu_custom_call.1} parent=1 // pred_check
      _
    $region3: #{tpu_custom_call.1} parent=1 // pred_check_branch
      %9 = sbr.rel (0) target = $region5
    $region4: #{tpu_custom_call.1} parent=1 // pred_region
      %s11 = ssub.s32 2816, 2816
      %12 = vsyncadd [#allocation3], %s11
      %s13 = sshll.u32 [#allocation2], 4
      %s14 = int_to_ptr.vmem [resolvable:$true] %s13
      %19 = dma.hbm_to_vmem [thread:$0]  %s0, 2816, %s14, [#allocation3], 128, 128, 8
    $region5: #{tpu_custom_call.1} parent=1 // pred_fallthru
      _
    // Predicated region
    $region6: #{tpu_custom_call.1} parent=1 // pred_check
      _
    $region7: #{tpu_custom_call.1} parent=1 // pred_check_branch
      %21 = sbr.rel (0) target = $region9
    $region8: #{tpu_custom_call.1} parent=1 // pred_region
      %22 = dma.done [#allocation3], 2816
    $region9: #{tpu_custom_call.1} parent=1 // pred_fallthru
      _
    %v23 = vld [vmem:[#allocation2] sm:$0xff]
    %s24 = scalar_lea.vmem [#allocation2], 8
    %v25 = vld [vmem:[%s24] sm:$0xff]
    %s26 = scalar_lea.vmem [#allocation2], 16
    %v27 = vld [vmem:[%s26] sm:$0xff]
    %s28 = scalar_lea.vmem [#allocation2], 24
    %v29 = vld [vmem:[%s28] sm:$0xff]
    %s30 = scalar_lea.vmem [#allocation2], 32
    %v31 = vld [vmem:[%s30] sm:$0xff]
    %s32 = scalar_lea.vmem [#allocation2], 40
    %v33 = vld [vmem:[%s32] sm:$0xff]
    %v34 = vmul.f32 %v23, %v23
    %v35 = vmul.f32 %v25, %v25
    %v36 = vadd.f32 %v34, %v35
    %v37 = vmul.f32 %v27, %v27
    %v38 = vadd.f32 %v36, %v37
    %v39 = vrsqrt.pop %v38
    %v40 = vsub.f32 0.0, %v23
    %v41 = vmul.f32 %v40, %v39
    %v42 = vsub.f32 0.0, %v25
    %v43 = vmul.f32 %v42, %v39
    %v44 = vsub.f32 0.0, %v27
    %v45 = vmul.f32 %v44, %v39
    %v46 = vmul.f32 %v31, %v45
    %v47 = vmul.f32 %v33, %v43
    %v48 = vsub.f32 %v46, %v47
    %v49 = vmul.f32 %v33, %v41
    %v50 = vmul.f32 %v29, %v45
    %v51 = vsub.f32 %v49, %v50
    %v52 = vmul.f32 %v29, %v43
    %v53 = vmul.f32 %v31, %v41
    %v54 = vsub.f32 %v52, %v53
    %v55 = vmul.f32 %v48, %v48
    %v56 = vmul.f32 %v51, %v51
    %v57 = vadd.f32 %v55, %v56
    %v58 = vmul.f32 %v54, %v54
    %v59 = vadd.f32 %v57, %v58
    %v60 = vrsqrt.pop %v59
    %v61 = vmul.f32 %v48, %v60
    %v62 = vmul.f32 %v51, %v60
    %v63 = vmul.f32 %v54, %v60
    %s64 = scalar_lea.vmem [#allocation2], 48
    %v65 = vld [vmem:[%s64] sm:$0xff]
    %s66 = scalar_lea.vmem [#allocation2], 80
    %v67 = vld [vmem:[%s66] sm:$0xff]
    %s68 = scalar_lea.vmem [#allocation2], 88
    %v69 = vld [vmem:[%s68] sm:$0xff]
    %s70 = scalar_lea.vmem [#allocation2], 96
    %v71 = vld [vmem:[%s70] sm:$0xff]
    %v72 = vmul.f32 %v29, %v67
    %v73 = vmul.f32 %v31, %v69
    %v74 = vadd.f32 %v72, %v73
    %v75 = vmul.f32 %v33, %v71
    %v76 = vadd.f32 %v74, %v75
    %v77 = vmul.f32 %v29, %v76
    %v78 = vsub.f32 %v67, %v77
    %v79 = vmul.f32 %v31, %v76
    %v80 = vsub.f32 %v69, %v79
    %v81 = vmul.f32 %v33, %v76
    %v82 = vsub.f32 %v71, %v81
    %v83 = vmul.f32 %v78, %v78
    %v84 = vmul.f32 %v80, %v80
    %v85 = vadd.f32 %v83, %v84
    %v86 = vmul.f32 %v82, %v82
    %v87 = vadd.f32 %v85, %v86
    %v88 = vrsqrt.pop %v87
    %v89 = vmul.f32 %v87, %v88
    %vm90 = vcmp.eq.f32.partialorder %v87, inf
    %v91 = vsel %vm90, %v87, %v89
    %vm92 = vcmp.eq.f32.partialorder %v87, 0.0
    %v93 = vand.u32 %v87, 2147483648
    %v94 = vsel %vm92, %v93, %v91
    %v95 = vadd.f32 %v94, 1.0
    %v96 = vrcp.pop %v95
    %v97 = vmul.f32 %v95, %v96
    %v98 = vsub.f32 2.0, %v97
    %v99 = vmul.f32 %v96, %v98
    %v100 = vmul.f32 %v99, 0.7
    %v101 = vmul.f32 %v100, %v78
    %v102 = vmul.f32 %v100, %v80
    %v103 = vmul.f32 %v100, %v82
    %v104 = vmul.f32 %v100, %v100
    %v105 = vmul.f32 %v104, %v87
    %v106 = vsub.f32 %v23, %v101
    %v107 = vsub.f32 %v25, %v102
    %v108 = vsub.f32 %v27, %v103
    %v109 = vmul.f32 %v106, %v106
    %v110 = vmul.f32 %v107, %v107
    %v111 = vadd.f32 %v109, %v110
    %v112 = vmul.f32 %v108, %v108
    %v113 = vadd.f32 %v111, %v112
    %v114 = vsub.f32 1.0, %v105
    %v115 = vrcp.pop %v113
    %v116 = vmul.f32 %v113, %v115
    %v117 = vsub.f32 2.0, %v116
    %v118 = vmul.f32 %v115, %v117
    %v119 = vmul.f32 %v114, %v118
    %v120 = vmul.f32 %v119, %v106
    %v121 = vsub.f32 %v120, %v101
    %v122 = vmul.f32 %v119, %v107
    %v123 = vsub.f32 %v122, %v102
    %v124 = vmul.f32 %v119, %v108
    %v125 = vsub.f32 %v124, %v103
    %v126 = vmul.f32 %v121, %v61
    %v127 = vmul.f32 %v123, %v62
    %v128 = vadd.f32 %v126, %v127
    %v129 = vmul.f32 %v125, %v63
    %v130 = vadd.f32 %v128, %v129
    %v131 = vmul.f32 %v121, %v41
    %v132 = vmul.f32 %v123, %v43
    %v133 = vadd.f32 %v131, %v132
    %v134 = vmul.f32 %v125, %v45
    %v135 = vadd.f32 %v133, %v134
    %v136 = vand.u32 2147483647, %v135
    %v137 = vand.u32 2147483647, %v130
    %v138 = vmin.f32 %v136, %v137
    %v139 = vmax.f32 %v136, %v137
    %v140 = vrcp.pop %v139
    %v141 = vmul.f32 %v138, %v140
    %v142 = vmul.f32 %v141, %v141
    %v143 = vmul.f32 0.002785687, %v142
    %v144 = vadd.f32 %v143, -0.015866
    %v145 = vmul.f32 %v144, %v142
    %v146 = vadd.f32 %v145, 0.04247222
    %v147 = vmul.f32 %v146, %v142
    %v148 = vadd.f32 %v147, -0.074975304
    %v149 = vmul.f32 %v148, %v142
    %v150 = vadd.f32 %v149, 0.1064488
    %v151 = vmul.f32 %v150, %v142
    %v152 = vadd.f32 %v151, -0.14207031
    %v153 = vmul.f32 %v152, %v142
    %v154 = vadd.f32 %v153, 0.19993454
    %v155 = vmul.f32 %v154, %v142
    %v156 = vadd.f32 %v155, -0.33333147
    %v157 = vmul.f32 %v156, %v142
    %v158 = vmul.f32 %v157, %v141
    %v159 = vadd.f32 %v158, %v141
    %vm160 = vcmp.gt.f32.partialorder %v137, %v136
    %v161 = vsub.f32 1.5707964, %v159
    %v162 = vsel %vm160, %v161, %v159
    %vm163 = vcmp.lt.f32.partialorder %v135, 0.0
    %v164 = vsub.f32 3.1415927, %v162
    %v165 = vsel %vm163, %v164, %v162
    %vm166 = vcmp.lt.s32.totalorder %v135, 0
    %v167 = vsel %vm166, 3.1415927, 0.0
    %vm168 = vcmp.eq.f32.partialorder %v130, 0.0
    %v169 = vsel %vm168, %v167, %v165
    %vm170 = vcmp.ne.f32.partialorder %v135, %v135
    %vm171 = vcmp.ne.f32.partialorder %v130, %v130
    %vm172 = vmor %vm170, %vm171
    %v173 = vsel %vm172, nan, %v169
    %vm174 = vcmp.lt.f32.partialorder %v135, 0.0
    %v175 = vsel %vm174, 2.3561945, 0.7853982
    %vm176 = vcmp.eq.s32.totalorder %v136, inf
    %vm177 = vcmp.eq.s32.totalorder %v137, inf
    %vm178 = vmand %vm176, %vm177
    %v179 = vsel %vm178, %v175, %v173
    %v180 = vand.u32 2147483647, %v179
    %v181 = vand.u32 %v130, 2147483648
    %v182 = vor.u32 %v180, %v181
    %vm183 = vcmp.ge.f32.partialorder %v182, 0.0
    %v184 = vadd.f32 %v182, 6.2831855
    %v185 = vsel %vm183, %v182, %v184
    %v186 = vmul.f32 %v65, %v185
    %v187 = vadd.f32 %v186, 0.0
    %v188 = vmul.f32 %v65, %v119
    %v189 = vadd.f32 %v188, 0.0
    %v190 = vadd.f32 %v65, 0.0
    %s191 = scalar_lea.vmem [#allocation2], 56
    %v192 = vld [vmem:[%s191] sm:$0xff]
    %s193 = scalar_lea.vmem [#allocation2], 104
    %v194 = vld [vmem:[%s193] sm:$0xff]
    %s195 = scalar_lea.vmem [#allocation2], 112
    %v196 = vld [vmem:[%s195] sm:$0xff]
    %s197 = scalar_lea.vmem [#allocation2], 120
    %v198 = vld [vmem:[%s197] sm:$0xff]
    %v199 = vmul.f32 %v29, %v194
    %v200 = vmul.f32 %v31, %v196
    %v201 = vadd.f32 %v199, %v200
    %v202 = vmul.f32 %v33, %v198
    %v203 = vadd.f32 %v201, %v202
    %v204 = vmul.f32 %v29, %v203
    %v205 = vsub.f32 %v194, %v204
    %v206 = vmul.f32 %v31, %v203
    %v207 = vsub.f32 %v196, %v206
    %v208 = vmul.f32 %v33, %v203
    %v209 = vsub.f32 %v198, %v208
    %v210 = vmul.f32 %v205, %v205
    %v211 = vmul.f32 %v207, %v207
    %v212 = vadd.f32 %v210, %v211
    %v213 = vmul.f32 %v209, %v209
    %v214 = vadd.f32 %v212, %v213
    %v215 = vrsqrt.pop %v214
    %v216 = vmul.f32 %v214, %v215
    %vm217 = vcmp.eq.f32.partialorder %v214, inf
    %v218 = vsel %vm217, %v214, %v216
    %vm219 = vcmp.eq.f32.partialorder %v214, 0.0
    %v220 = vand.u32 %v214, 2147483648
    %v221 = vsel %vm219, %v220, %v218
    %v222 = vadd.f32 %v221, 1.0
    %v223 = vrcp.pop %v222
    %v224 = vmul.f32 %v222, %v223
    %v225 = vsub.f32 2.0, %v224
    %v226 = vmul.f32 %v223, %v225
    %v227 = vmul.f32 %v226, 0.7
    %v228 = vmul.f32 %v227, %v205
    %v229 = vmul.f32 %v227, %v207
    %v230 = vmul.f32 %v227, %v209
    %v231 = vmul.f32 %v227, %v227
    %v232 = vmul.f32 %v231, %v214
    %v233 = vsub.f32 %v23, %v228
    %v234 = vsub.f32 %v25, %v229
    %v235 = vsub.f32 %v27, %v230
    %v236 = vmul.f32 %v233, %v233
    %v237 = vmul.f32 %v234, %v234
    %v238 = vadd.f32 %v236, %v237
    %v239 = vmul.f32 %v235, %v235
    %v240 = vadd.f32 %v238, %v239
    %v241 = vsub.f32 1.0, %v232
    %v242 = vrcp.pop %v240
    %v243 = vmul.f32 %v240, %v242
    %v244 = vsub.f32 2.0, %v243
    %v245 = vmul.f32 %v242, %v244
    %v246 = vmul.f32 %v241, %v245
    %v247 = vmul.f32 %v246, %v233
    %v248 = vsub.f32 %v247, %v228
    %v249 = vmul.f32 %v246, %v234
    %v250 = vsub.f32 %v249, %v229
    %v251 = vmul.f32 %v246, %v235
    %v252 = vsub.f32 %v251, %v230
    %v253 = vmul.f32 %v248, %v61
    %v254 = vmul.f32 %v250, %v62
    %v255 = vadd.f32 %v253, %v254
    %v256 = vmul.f32 %v252, %v63
    %v257 = vadd.f32 %v255, %v256
    %v258 = vmul.f32 %v248, %v41
    %v259 = vmul.f32 %v250, %v43
    %v260 = vadd.f32 %v258, %v259
    %v261 = vmul.f32 %v252, %v45
    %v262 = vadd.f32 %v260, %v261
    %v263 = vand.u32 2147483647, %v262
    %v264 = vand.u32 2147483647, %v257
    %v265 = vmin.f32 %v263, %v264
    %v266 = vmax.f32 %v263, %v264
    %v267 = vrcp.pop %v266
    %v268 = vmul.f32 %v265, %v267
    %v269 = vmul.f32 %v268, %v268
    %v270 = vmul.f32 0.002785687, %v269
    %v271 = vadd.f32 %v270, -0.015866
    %v272 = vmul.f32 %v271, %v269
    %v273 = vadd.f32 %v272, 0.04247222
    %v274 = vmul.f32 %v273, %v269
    %v275 = vadd.f32 %v274, -0.074975304
    %v276 = vmul.f32 %v275, %v269
    %v277 = vadd.f32 %v276, 0.1064488
    %v278 = vmul.f32 %v277, %v269
    %v279 = vadd.f32 %v278, -0.14207031
    %v280 = vmul.f32 %v279, %v269
    %v281 = vadd.f32 %v280, 0.19993454
    %v282 = vmul.f32 %v281, %v269
    %v283 = vadd.f32 %v282, -0.33333147
    %v284 = vmul.f32 %v283, %v269
    %v285 = vmul.f32 %v284, %v268
    %v286 = vadd.f32 %v285, %v268
    %vm287 = vcmp.gt.f32.partialorder %v264, %v263
    %v288 = vsub.f32 1.5707964, %v286
    %v289 = vsel %vm287, %v288, %v286
    %vm290 = vcmp.lt.f32.partialorder %v262, 0.0
    %v291 = vsub.f32 3.1415927, %v289
    %v292 = vsel %vm290, %v291, %v289
    %vm293 = vcmp.lt.s32.totalorder %v262, 0
    %v294 = vsel %vm293, 3.1415927, 0.0
    %vm295 = vcmp.eq.f32.partialorder %v257, 0.0
    %v296 = vsel %vm295, %v294, %v292
    %vm297 = vcmp.ne.f32.partialorder %v262, %v262
    %vm298 = vcmp.ne.f32.partialorder %v257, %v257
    %vm299 = vmor %vm297, %vm298
    %v300 = vsel %vm299, nan, %v296
    %vm301 = vcmp.lt.f32.partialorder %v262, 0.0
    %v302 = vsel %vm301, 2.3561945, 0.7853982
    %vm303 = vcmp.eq.s32.totalorder %v263, inf
    %vm304 = vcmp.eq.s32.totalorder %v264, inf
    %vm305 = vmand %vm303, %vm304
    %v306 = vsel %vm305, %v302, %v300
    %v307 = vand.u32 2147483647, %v306
    %v308 = vand.u32 %v257, 2147483648
    %v309 = vor.u32 %v307, %v308
    %vm310 = vcmp.ge.f32.partialorder %v309, 0.0
    %v311 = vadd.f32 %v309, 6.2831855
    %v312 = vsel %vm310, %v309, %v311
    %v313 = vmul.f32 %v192, %v312
    %v314 = vadd.f32 %v187, %v313
    %v315 = vmul.f32 %v192, %v246
    %v316 = vadd.f32 %v189, %v315
    %v317 = vadd.f32 %v190, %v192
    %s318 = scalar_lea.vmem [#allocation2], 64
    %v319 = vld [vmem:[%s318] sm:$0xff]
    %s320 = scalar_lea.vmem [#allocation2], 128
    %v321 = vld [vmem:[%s320] sm:$0xff]
    %s322 = scalar_lea.vmem [#allocation2], 136
    %v323 = vld [vmem:[%s322] sm:$0xff]
    %s324 = scalar_lea.vmem [#allocation2], 144
    %v325 = vld [vmem:[%s324] sm:$0xff]
    %v326 = vmul.f32 %v29, %v321
    %v327 = vmul.f32 %v31, %v323
    %v328 = vadd.f32 %v326, %v327
    %v329 = vmul.f32 %v33, %v325
    %v330 = vadd.f32 %v328, %v329
    %v331 = vmul.f32 %v29, %v330
    %v332 = vsub.f32 %v321, %v331
    %v333 = vmul.f32 %v31, %v330
    %v334 = vsub.f32 %v323, %v333
    %v335 = vmul.f32 %v33, %v330
    %v336 = vsub.f32 %v325, %v335
    %v337 = vmul.f32 %v332, %v332
    %v338 = vmul.f32 %v334, %v334
    %v339 = vadd.f32 %v337, %v338
    %v340 = vmul.f32 %v336, %v336
    %v341 = vadd.f32 %v339, %v340
    %v342 = vrsqrt.pop %v341
    %v343 = vmul.f32 %v341, %v342
    %vm344 = vcmp.eq.f32.partialorder %v341, inf
    %v345 = vsel %vm344, %v341, %v343
    %vm346 = vcmp.eq.f32.partialorder %v341, 0.0
    %v347 = vand.u32 %v341, 2147483648
    %v348 = vsel %vm346, %v347, %v345
    %v349 = vadd.f32 %v348, 1.0
    %v350 = vrcp.pop %v349
    %v351 = vmul.f32 %v349, %v350
    %v352 = vsub.f32 2.0, %v351
    %v353 = vmul.f32 %v350, %v352
    %v354 = vmul.f32 %v353, 0.7
    %v355 = vmul.f32 %v354, %v332
    %v356 = vmul.f32 %v354, %v334
    %v357 = vmul.f32 %v354, %v336
    %v358 = vmul.f32 %v354, %v354
    %v359 = vmul.f32 %v358, %v341
    %v360 = vsub.f32 %v23, %v355
    %v361 = vsub.f32 %v25, %v356
    %v362 = vsub.f32 %v27, %v357
    %v363 = vmul.f32 %v360, %v360
    %v364 = vmul.f32 %v361, %v361
    %v365 = vadd.f32 %v363, %v364
    %v366 = vmul.f32 %v362, %v362
    %v367 = vadd.f32 %v365, %v366
    %v368 = vsub.f32 1.0, %v359
    %v369 = vrcp.pop %v367
    %v370 = vmul.f32 %v367, %v369
    %v371 = vsub.f32 2.0, %v370
    %v372 = vmul.f32 %v369, %v371
    %v373 = vmul.f32 %v368, %v372
    %v374 = vmul.f32 %v373, %v360
    %v375 = vsub.f32 %v374, %v355
    %v376 = vmul.f32 %v373, %v361
    %v377 = vsub.f32 %v376, %v356
    %v378 = vmul.f32 %v373, %v362
    %v379 = vsub.f32 %v378, %v357
    %v380 = vmul.f32 %v375, %v61
    %v381 = vmul.f32 %v377, %v62
    %v382 = vadd.f32 %v380, %v381
    %v383 = vmul.f32 %v379, %v63
    %v384 = vadd.f32 %v382, %v383
    %v385 = vmul.f32 %v375, %v41
    %v386 = vmul.f32 %v377, %v43
    %v387 = vadd.f32 %v385, %v386
    %v388 = vmul.f32 %v379, %v45
    %v389 = vadd.f32 %v387, %v388
    %v390 = vand.u32 2147483647, %v389
    %v391 = vand.u32 2147483647, %v384
    %v392 = vmin.f32 %v390, %v391
    %v393 = vmax.f32 %v390, %v391
    %v394 = vrcp.pop %v393
    %v395 = vmul.f32 %v392, %v394
    %v396 = vmul.f32 %v395, %v395
    %v397 = vmul.f32 0.002785687, %v396
    %v398 = vadd.f32 %v397, -0.015866
    %v399 = vmul.f32 %v398, %v396
    %v400 = vadd.f32 %v399, 0.04247222
    %v401 = vmul.f32 %v400, %v396
    %v402 = vadd.f32 %v401, -0.074975304
    %v403 = vmul.f32 %v402, %v396
    %v404 = vadd.f32 %v403, 0.1064488
    %v405 = vmul.f32 %v404, %v396
    %v406 = vadd.f32 %v405, -0.14207031
    %v407 = vmul.f32 %v406, %v396
    %v408 = vadd.f32 %v407, 0.19993454
    %v409 = vmul.f32 %v408, %v396
    %v410 = vadd.f32 %v409, -0.33333147
    %v411 = vmul.f32 %v410, %v396
    %v412 = vmul.f32 %v411, %v395
    %v413 = vadd.f32 %v412, %v395
    %vm414 = vcmp.gt.f32.partialorder %v391, %v390
    %v415 = vsub.f32 1.5707964, %v413
    %v416 = vsel %vm414, %v415, %v413
    %vm417 = vcmp.lt.f32.partialorder %v389, 0.0
    %v418 = vsub.f32 3.1415927, %v416
    %v419 = vsel %vm417, %v418, %v416
    %vm420 = vcmp.lt.s32.totalorder %v389, 0
    %v421 = vsel %vm420, 3.1415927, 0.0
    %vm422 = vcmp.eq.f32.partialorder %v384, 0.0
    %v423 = vsel %vm422, %v421, %v419
    %vm424 = vcmp.ne.f32.partialorder %v389, %v389
    %vm425 = vcmp.ne.f32.partialorder %v384, %v384
    %vm426 = vmor %vm424, %vm425
    %v427 = vsel %vm426, nan, %v423
    %vm428 = vcmp.lt.f32.partialorder %v389, 0.0
    %v429 = vsel %vm428, 2.3561945, 0.7853982
    %vm430 = vcmp.eq.s32.totalorder %v390, inf
    %vm431 = vcmp.eq.s32.totalorder %v391, inf
    %vm432 = vmand %vm430, %vm431
    %v433 = vsel %vm432, %v429, %v427
    %v434 = vand.u32 2147483647, %v433
    %v435 = vand.u32 %v384, 2147483648
    %v436 = vor.u32 %v434, %v435
    %vm437 = vcmp.ge.f32.partialorder %v436, 0.0
    %v438 = vadd.f32 %v436, 6.2831855
    %v439 = vsel %vm437, %v436, %v438
    %v440 = vmul.f32 %v319, %v439
    %v441 = vadd.f32 %v314, %v440
    %v442 = vmul.f32 %v319, %v373
    %v443 = vadd.f32 %v316, %v442
    %v444 = vadd.f32 %v317, %v319
    %s445 = scalar_lea.vmem [#allocation2], 72
    %v446 = vld [vmem:[%s445] sm:$0xff]
    %s447 = scalar_lea.vmem [#allocation2], 152
    %v448 = vld [vmem:[%s447] sm:$0xff]
    %s449 = scalar_lea.vmem [#allocation2], 160
    %v450 = vld [vmem:[%s449] sm:$0xff]
    %s451 = scalar_lea.vmem [#allocation2], 168
    %v452 = vld [vmem:[%s451] sm:$0xff]
    %v453 = vmul.f32 %v29, %v448
    %v454 = vmul.f32 %v31, %v450
    %v455 = vadd.f32 %v453, %v454
    %v456 = vmul.f32 %v33, %v452
    %v457 = vadd.f32 %v455, %v456
    %v458 = vmul.f32 %v29, %v457
    %v459 = vsub.f32 %v448, %v458
    %v460 = vmul.f32 %v31, %v457
    %v461 = vsub.f32 %v450, %v460
    %v462 = vmul.f32 %v33, %v457
    %v463 = vsub.f32 %v452, %v462
    %v464 = vmul.f32 %v459, %v459
    %v465 = vmul.f32 %v461, %v461
    %v466 = vadd.f32 %v464, %v465
    %v467 = vmul.f32 %v463, %v463
    %v468 = vadd.f32 %v466, %v467
    %v469 = vrsqrt.pop %v468
    %v470 = vmul.f32 %v468, %v469
    %vm471 = vcmp.eq.f32.partialorder %v468, inf
    %v472 = vsel %vm471, %v468, %v470
    %vm473 = vcmp.eq.f32.partialorder %v468, 0.0
    %v474 = vand.u32 %v468, 2147483648
    %v475 = vsel %vm473, %v474, %v472
    %v476 = vadd.f32 %v475, 1.0
    %v477 = vrcp.pop %v476
    %v478 = vmul.f32 %v476, %v477
    %v479 = vsub.f32 2.0, %v478
    %v480 = vmul.f32 %v477, %v479
    %v481 = vmul.f32 %v480, 0.7
    %v482 = vmul.f32 %v481, %v459
    %v483 = vmul.f32 %v481, %v461
    %v484 = vmul.f32 %v481, %v463
    %v485 = vmul.f32 %v481, %v481
    %v486 = vmul.f32 %v485, %v468
    %v487 = vsub.f32 %v23, %v482
    %v488 = vsub.f32 %v25, %v483
    %v489 = vsub.f32 %v27, %v484
    %v490 = vmul.f32 %v487, %v487
    %v491 = vmul.f32 %v488, %v488
    %v492 = vadd.f32 %v490, %v491
    %v493 = vmul.f32 %v489, %v489
    %v494 = vadd.f32 %v492, %v493
    %v495 = vsub.f32 1.0, %v486
    %v496 = vrcp.pop %v494
    %v497 = vmul.f32 %v494, %v496
    %v498 = vsub.f32 2.0, %v497
    %v499 = vmul.f32 %v496, %v498
    %v500 = vmul.f32 %v495, %v499
    %v501 = vmul.f32 %v500, %v487
    %v502 = vsub.f32 %v501, %v482
    %v503 = vmul.f32 %v500, %v488
    %v504 = vsub.f32 %v503, %v483
    %v505 = vmul.f32 %v500, %v489
    %v506 = vsub.f32 %v505, %v484
    %v507 = vmul.f32 %v502, %v61
    %v508 = vmul.f32 %v504, %v62
    %v509 = vadd.f32 %v507, %v508
    %v510 = vmul.f32 %v506, %v63
    %v511 = vadd.f32 %v509, %v510
    %v512 = vmul.f32 %v502, %v41
    %v513 = vmul.f32 %v504, %v43
    %v514 = vadd.f32 %v512, %v513
    %v515 = vmul.f32 %v506, %v45
    %v516 = vadd.f32 %v514, %v515
    %v517 = vand.u32 2147483647, %v516
    %v518 = vand.u32 2147483647, %v511
    %v519 = vmin.f32 %v517, %v518
    %v520 = vmax.f32 %v517, %v518
    %v521 = vrcp.pop %v520
    %v522 = vmul.f32 %v519, %v521
    %v523 = vmul.f32 %v522, %v522
    %v524 = vmul.f32 0.002785687, %v523
    %v525 = vadd.f32 %v524, -0.015866
    %v526 = vmul.f32 %v525, %v523
    %v527 = vadd.f32 %v526, 0.04247222
    %v528 = vmul.f32 %v527, %v523
    %v529 = vadd.f32 %v528, -0.074975304
    %v530 = vmul.f32 %v529, %v523
    %v531 = vadd.f32 %v530, 0.1064488
    %v532 = vmul.f32 %v531, %v523
    %v533 = vadd.f32 %v532, -0.14207031
    %v534 = vmul.f32 %v533, %v523
    %v535 = vadd.f32 %v534, 0.19993454
    %v536 = vmul.f32 %v535, %v523
    %v537 = vadd.f32 %v536, -0.33333147
    %v538 = vmul.f32 %v537, %v523
    %v539 = vmul.f32 %v538, %v522
    %v540 = vadd.f32 %v539, %v522
    %vm541 = vcmp.gt.f32.partialorder %v518, %v517
    %v542 = vsub.f32 1.5707964, %v540
    %v543 = vsel %vm541, %v542, %v540
    %vm544 = vcmp.lt.f32.partialorder %v516, 0.0
    %v545 = vsub.f32 3.1415927, %v543
    %v546 = vsel %vm544, %v545, %v543
    %vm547 = vcmp.lt.s32.totalorder %v516, 0
    %v548 = vsel %vm547, 3.1415927, 0.0
    %vm549 = vcmp.eq.f32.partialorder %v511, 0.0
    %v550 = vsel %vm549, %v548, %v546
    %vm551 = vcmp.ne.f32.partialorder %v516, %v516
    %vm552 = vcmp.ne.f32.partialorder %v511, %v511
    %vm553 = vmor %vm551, %vm552
    %v554 = vsel %vm553, nan, %v550
    %vm555 = vcmp.lt.f32.partialorder %v516, 0.0
    %v556 = vsel %vm555, 2.3561945, 0.7853982
    %vm557 = vcmp.eq.s32.totalorder %v517, inf
    %vm558 = vcmp.eq.s32.totalorder %v518, inf
    %vm559 = vmand %vm557, %vm558
    %v560 = vsel %vm559, %v556, %v554
    %v561 = vand.u32 2147483647, %v560
    %v562 = vand.u32 %v511, 2147483648
    %v563 = vor.u32 %v561, %v562
    %vm564 = vcmp.ge.f32.partialorder %v563, 0.0
    %v565 = vadd.f32 %v563, 6.2831855
    %v566 = vsel %vm564, %v563, %v565
    %v567 = vmul.f32 %v446, %v566
    %v568 = vadd.f32 %v441, %v567
    %v569 = vmul.f32 %v446, %v500
    %v570 = vadd.f32 %v443, %v569
    %v571 = vadd.f32 %v444, %v446
    %v572 = vrcp.pop %v571
    %v573 = vmul.f32 %v571, %v572
    %v574 = vsub.f32 2.0, %v573
    %v575 = vmul.f32 %v572, %v574
    %v576 = vmul.f32 %v568, %v575
    %v577 = vand.u32 2147483647, %v576
    %vm578 = vcmp.le.f32.partialorder %v577, 0.7853982
    %vm579 = vcmp.lt.s32.totalorder %v576, 0
    %v580 = vand.u32 %v576, 2139095040
    %v581 = vshrl.u32 %v580, 23
    %v582 = vsub.s32 %v581, 127
    %v583 = vand.u32 2147483647, %v576
    %v584 = vand.u32 %v583, 8388607
    %v585 = vor.u32 %v584, 8388608
    %v586 = vsub.s32 0, %v585
    %v587 = vadd.s32 %v582, 1
    %vm588 = vcmp.gt.s32.totalorder %v587, 0
    %v589 = vsel %vm588, %v587, 0
    %v590 = vshrl.u32 %v589, 5
    %v591 = vand.u32 %v589, 31
    %v592 = vsub.s32 32, %v591
    %v593 = vshrl.u32 683565275, %v592
    %v594 = vshll.u32 683565275, %v591
    %v595 = vshrl.u32 2475754826, %v592
    %v596 = vor.u32 %v594, %v595
    %v597 = vshll.u32 2475754826, %v591
    %v598 = vshrl.u32 2131351028, %v592
    %v599 = vor.u32 %v597, %v598
    %v600 = vshll.u32 2131351028, %v591
    %v601 = vshrl.u32 2102212464, %v592
    %v602 = vor.u32 %v600, %v601
    %v603 = vshll.u32 2102212464, %v591
    %v604 = vshrl.u32 920167782, %v592
    %v605 = vor.u32 %v603, %v604
    %v606 = vshll.u32 920167782, %v591
    %v607 = vshrl.u32 1326507024, %v592
    %v608 = vor.u32 %v606, %v607
    %vm609 = vcmp.lt.s32.totalorder %v590, 1
    %vm610 = vcmp.lt.s32.totalorder %v590, 2
    %vm611 = vcmp.lt.s32.totalorder %v590, 3
    %vm612 = vcmp.lt.s32.totalorder %v590, 4
    %v613 = vsel %vm609, %v593, %v596
    %v614 = vsel %vm612, %v602, 2102212464
    %v615 = vsel %vm611, %v599, %v614
    %v616 = vsel %vm610, %v613, %v615
    %v617 = vsel %vm609, %v596, %v599
    %v618 = vsel %vm612, %v605, 920167782
    %v619 = vsel %vm611, %v602, %v618
    %v620 = vsel %vm610, %v617, %v619
    %v621 = vsel %vm609, %v599, %v602
    %v622 = vsel %vm612, %v608, 1326507024
    %v623 = vsel %vm611, %v605, %v622
    %v624 = vsel %vm610, %v621, %v623
    %v625 = vshll.u32 %v585, 8
    %v626 = vmul.u32.u64.compose %v625, %v624
    %v627 = vextract.low.u32 %v626
    %v628 = vextract.high.u32 %v626
    %v629 = vmul.u32.u64.compose %v625, %v620
    %v630 = vextract.low.u32 %v629
    %v631 = vextract.high.u32 %v629
    %v632 = vmul.u32 %v625, %v616
    %v633 = vadd.s32 %v628, %v630
    %vm634 = vc.u32 %v628, %v630
    %v635 = vadd.s32 %v631, 1
    %v636 = vsel %vm634, %v635, %v631
    %v637 = vadd.s32 %v632, %v636
    %v638 = vadd.s32 %v637, 536870912
    %v639 = vshrl.u32 %v638, 30
    %v640 = vshll.u32 %v639, 30
    %v641 = vsub.s32 %v637, %v640
    %vm642 = vcmp.lt.s32.totalorder %v641, 0
    %v643 = vsub.s32 0, %v641
    %v644 = vsel %vm642, %v643, %v641
    %v645 = vclz %v644
    %v646 = vsub.s32 %v645, 2
    %vm647 = vcmp.gt.s32.totalorder 0, %v646
    %v648 = vsel %vm647, 0, %v646
    %v649 = vsub.s32 32, %v648
    %v650 = vshll.u32 %v641, %v648
    %v651 = vshrl.u32 %v633, %v649
    %v652 = vor.u32 %v650, %v651
    %v653 = vsub.s32 4294967266, %v648
    %v654 = vadd.s32 %v653, 127
    %v655 = vshll.u32 %v654, 23
    %v656 = vor.u32 4788187, %v655
    %v657 = vand.u32 2147483647, %v656
    %v659 = vcvt.s32.f32 %v652
    %v660 = vmul.f32 %v659, %v657
    %v661 = vxor.u32 %v660, 2147483648
    %v662 = vsel %vm579, %v661, %v660
    %v663 = vsub.s32 4, %v639
    %v664 = vsel %vm579, %v663, %v639
    %v665 = vsel %vm578, %v576, %v662
    %v666 = vsel %vm578, 0, %v664
    %v667 = vcosq.f32.pop %v665
    %v668 = vsinq.f32.pop %v665
    %vm669 = vweird.f32 %v576
    %v670 = vand.u32 %v666, 3
    %vm671 = vcmp.lt.s32.totalorder %v670, 2
    %vm672 = vcmp.eq.s32.totalorder %v670, 0
    %v673 = vxor.u32 %v668, 2147483648
    %v674 = vsel %vm672, %v667, %v673
    %vm675 = vcmp.eq.s32.totalorder %v670, 2
    %v676 = vxor.u32 %v667, 2147483648
    %v677 = vsel %vm675, %v676, %v668
    %v678 = vsel %vm671, %v674, %v677
    %v679 = vsel %vm669, nan, %v678
    %v680 = vand.u32 2147483647, %v576
    %vm681 = vcmp.le.f32.partialorder %v680, 0.7853982
    %vm682 = vcmp.lt.s32.totalorder %v576, 0
    %v683 = vand.u32 %v576, 2139095040
    %v684 = vshrl.u32 %v683, 23
    %v685 = vsub.s32 %v684, 127
    %v686 = vand.u32 2147483647, %v576
    %v687 = vand.u32 %v686, 8388607
    %v688 = vor.u32 %v687, 8388608
    %v689 = vsub.s32 0, %v688
    %v690 = vadd.s32 %v685, 1
    %vm691 = vcmp.gt.s32.totalorder %v690, 0
    %v692 = vsel %vm691, %v690, 0
    %v693 = vshrl.u32 %v692, 5
    %v694 = vand.u32 %v692, 31
    %v695 = vsub.s32 32, %v694
    %v696 = vshrl.u32 683565275, %v695
    %v697 = vshll.u32 683565275, %v694
    %v698 = vshrl.u32 2475754826, %v695
    %v699 = vor.u32 %v697, %v698
    %v700 = vshll.u32 2475754826, %v694
    %v701 = vshrl.u32 2131351028, %v695
    %v702 = vor.u32 %v700, %v701
    %v703 = vshll.u32 2131351028, %v694
    %v704 = vshrl.u32 2102212464, %v695
    %v705 = vor.u32 %v703, %v704
    %v706 = vshll.u32 2102212464, %v694
    %v707 = vshrl.u32 920167782, %v695
    %v708 = vor.u32 %v706, %v707
    %v709 = vshll.u32 920167782, %v694
    %v710 = vshrl.u32 1326507024, %v695
    %v711 = vor.u32 %v709, %v710
    %vm712 = vcmp.lt.s32.totalorder %v693, 1
    %vm713 = vcmp.lt.s32.totalorder %v693, 2
    %vm714 = vcmp.lt.s32.totalorder %v693, 3
    %vm715 = vcmp.lt.s32.totalorder %v693, 4
    %v716 = vsel %vm712, %v696, %v699
    %v717 = vsel %vm715, %v705, 2102212464
    %v718 = vsel %vm714, %v702, %v717
    %v719 = vsel %vm713, %v716, %v718
    %v720 = vsel %vm712, %v699, %v702
    %v721 = vsel %vm715, %v708, 920167782
    %v722 = vsel %vm714, %v705, %v721
    %v723 = vsel %vm713, %v720, %v722
    %v724 = vsel %vm712, %v702, %v705
    %v725 = vsel %vm715, %v711, 1326507024
    %v726 = vsel %vm714, %v708, %v725
    %v727 = vsel %vm713, %v724, %v726
    %v728 = vshll.u32 %v688, 8
    %v729 = vmul.u32.u64.compose %v728, %v727
    %v730 = vextract.low.u32 %v729
    %v731 = vextract.high.u32 %v729
    %v732 = vmul.u32.u64.compose %v728, %v723
    %v733 = vextract.low.u32 %v732
    %v734 = vextract.high.u32 %v732
    %v735 = vmul.u32 %v728, %v719
    %v736 = vadd.s32 %v731, %v733
    %vm737 = vc.u32 %v731, %v733
    %v738 = vadd.s32 %v734, 1
    %v739 = vsel %vm737, %v738, %v734
    %v740 = vadd.s32 %v735, %v739
    %v741 = vadd.s32 %v740, 536870912
    %v742 = vshrl.u32 %v741, 30
    %v743 = vshll.u32 %v742, 30
    %v744 = vsub.s32 %v740, %v743
    %vm745 = vcmp.lt.s32.totalorder %v744, 0
    %v746 = vsub.s32 0, %v744
    %v747 = vsel %vm745, %v746, %v744
    %v748 = vclz %v747
    %v749 = vsub.s32 %v748, 2
    %vm750 = vcmp.gt.s32.totalorder 0, %v749
    %v751 = vsel %vm750, 0, %v749
    %v752 = vsub.s32 32, %v751
    %v753 = vshll.u32 %v744, %v751
    %v754 = vshrl.u32 %v736, %v752
    %v755 = vor.u32 %v753, %v754
    %v756 = vsub.s32 4294967266, %v751
    %v757 = vadd.s32 %v756, 127
    %v758 = vshll.u32 %v757, 23
    %v759 = vor.u32 4788187, %v758
    %v760 = vand.u32 2147483647, %v759
    %v762 = vcvt.s32.f32 %v755
    %v763 = vmul.f32 %v762, %v760
    %v764 = vxor.u32 %v763, 2147483648
    %v765 = vsel %vm682, %v764, %v763
    %v766 = vsub.s32 4, %v742
    %v767 = vsel %vm682, %v766, %v742
    %v768 = vsel %vm681, %v576, %v765
    %v769 = vsel %vm681, 0, %v767
    %v770 = vcosq.f32.pop %v768
    %v771 = vsinq.f32.pop %v768
    %vm772 = vweird.f32 %v576
    %v773 = vadd.s32 %v769, 3
    %v774 = vand.u32 %v773, 3
    %vm775 = vcmp.lt.s32.totalorder %v774, 2
    %vm776 = vcmp.eq.s32.totalorder %v774, 0
    %v777 = vxor.u32 %v771, 2147483648
    %v778 = vsel %vm776, %v770, %v777
    %vm779 = vcmp.eq.s32.totalorder %v774, 2
    %v780 = vxor.u32 %v770, 2147483648
    %v781 = vsel %vm779, %v780, %v771
    %v782 = vsel %vm775, %v778, %v781
    %v783 = vsel %vm772, nan, %v782
    %v784 = vmul.f32 %v41, %v679
    %v785 = vmul.f32 %v61, %v783
    %v786 = vadd.f32 %v784, %v785
    %v787 = vmul.f32 %v43, %v679
    %v788 = vmul.f32 %v62, %v783
    %v789 = vadd.f32 %v787, %v788
    %v790 = vmul.f32 %v45, %v679
    %v791 = vmul.f32 %v63, %v783
    %v792 = vadd.f32 %v790, %v791
    %v793 = vmul.f32 %v570, %v575
    %v794 = vlog2.pop %v793
    %v795 = vmul.f32 %v794, 0.6931472
    %v796 = vmul.f32 %v789, %v33
    %v797 = vmul.f32 %v792, %v31
    %v798 = vsub.f32 %v796, %v797
    %v799 = vmul.f32 %v792, %v29
    %v800 = vmul.f32 %v786, %v33
    %v801 = vsub.f32 %v799, %v800
    %v802 = vmul.f32 %v786, %v31
    %v803 = vmul.f32 %v789, %v29
    %v804 = vsub.f32 %v802, %v803
    %v805 = vmul.f32 %v798, %v798
    %v806 = vmul.f32 %v801, %v801
    %v807 = vadd.f32 %v805, %v806
    %v808 = vmul.f32 %v804, %v804
    %v809 = vadd.f32 %v807, %v808
    %v810 = vrsqrt.pop %v809
    %811 = vst [vmem:[#allocation5] sm:$0xff] %v786
    %v812 = vmul.f32 %v798, %v810
    %s813 = scalar_lea.vmem [#allocation5], 24
    %814 = vst [vmem:[%s813] sm:$0xff] %v812
    %s815 = scalar_lea.vmem [#allocation5], 8
    %816 = vst [vmem:[%s815] sm:$0xff] %v789
    %v817 = vmul.f32 %v801, %v810
    %s818 = scalar_lea.vmem [#allocation5], 32
    %819 = vst [vmem:[%s818] sm:$0xff] %v817
    %s820 = scalar_lea.vmem [#allocation5], 16
    %821 = vst [vmem:[%s820] sm:$0xff] %v792
    %v822 = vmul.f32 %v804, %v810
    %s823 = scalar_lea.vmem [#allocation5], 40
    %824 = vst [vmem:[%s823] sm:$0xff] %v822
    %s825 = scalar_lea.vmem [#allocation5], 48
    %826 = vst [vmem:[%s825] sm:$0xff] %v795
    // Predicated region
    $region10: #{tpu_custom_call.1} parent=1 // pred_check
      _
    $region11: #{tpu_custom_call.1} parent=1 // pred_check_branch
      %828 = sbr.rel (0) target = $region13
    $region12: #{tpu_custom_call.1} parent=1 // pred_region
      %s830 = ssub.s32 896, 896
      %831 = vsyncadd [#allocation4], %s830
      %s832 = sshll.u32 [#allocation5], 4
      %s833 = int_to_ptr.vmem [resolvable:$true] %s832
      %838 = dma.vmem_to_hbm [thread:$0]  %s833, 896, %s1, [#allocation4], 128, 128, 8
    $region13: #{tpu_custom_call.1} parent=1 // pred_fallthru
      _
    // Predicated region
    $region14: #{tpu_custom_call.1} parent=1 // pred_check
      _
    $region15: #{tpu_custom_call.1} parent=1 // pred_check_branch
      %840 = sbr.rel (0) target = $region17
    $region16: #{tpu_custom_call.1} parent=1 // pred_region
      %841 = dma.done [#allocation4], 896
    $region17: #{tpu_custom_call.1} parent=1 // pred_fallthru
      _
    %842 = vsyncpa [#allocation3], 1
    %843 = vsyncpa [#allocation4], 1

</llo_original>
